<compile_context>
chip_gen: v5e
topology: v5e:2x2
jax: 0.10.0
libtpu: 0.0.40
codegen_flags: <defaults>
</compile_context>

<pallas_src>
import functools

import jax
import jax.numpy as jnp
from jax import lax
from jax.experimental import pallas as pl
from jax.experimental.pallas import tpu as pltpu


def _vmem():
    return pl.BlockSpec(memory_space=pltpu.MemorySpace.VMEM)


def _batchnorm(x, gamma, beta, eps=1e-5):
    # Training-mode BatchNorm1d: per-channel stats over all rows (B*T), biased var.
    mean = jnp.mean(x, axis=0, keepdims=True)
    var = jnp.mean(jnp.square(x - mean), axis=0, keepdims=True)
    return (x - mean) * lax.rsqrt(var + eps) * gamma + beta


# ------------------------------ fused kernel --------------------------------

def fused_rnn_kernel(x_ref, w_enc_ref, b_enc_ref, gamma_ref, beta_ref,
                     wih_ref, whh_ref, bias_ref, h0_ref, c0_ref, mask_ref,
                     w_fc_ref, b_fc_ref,
                     logits_ref, hn_ref, cn_ref,
                     y_sc,
                     *, seq_len, batch):
    T, B = seq_len, batch
    H = w_enc_ref.shape[1]
    n_layers = wih_ref.shape[0]

    gamma = gamma_ref[...]                      # (1, H)  hoisted loads
    beta = beta_ref[...]                        # (1, H)

    # ---------------- notes_encoder Linear + BatchNorm1d (batch stats) ------
    enc = jnp.dot(x_ref[...], w_enc_ref[...],
                  preferred_element_type=jnp.float32) + b_enc_ref[...]   # (T*B, H)
    enc = _batchnorm(enc, gamma, beta)
    # TODO(synk): nn.Dropout(0.25) is stochastic; applied as identity here.

    keep = mask_ref[...] > 0.0                  # (T*B, 1) bool, hoisted compare

    # ------------------------------ stacked LSTM ----------------------------
    y = enc                                     # current layer input, (T*B, H)
    for layer in range(n_layers):               # static layer loop
        wih = wih_ref[layer]                    # (H, 4H)      gate order i,f,g,o
        whh = whh_ref[layer]                    # (H, 4H)
        b = bias_ref[layer]                     # (1, 4H) == b_ih + b_hh

        # Hoisted input projection: one big matmul instead of T tiny ones.
        gx = jnp.dot(y, wih, preferred_element_type=jnp.float32) + b    # (T*B, 4H)

        h = h0_ref[layer]                       # (B, H)
        c = c0_ref[layer]                       # (B, H)
        # Short static trip count -> fully unrolled recurrence, static slices.
        # TODO(synk): for large T/B stream the sequence with a T-grid /
        # emit_pipeline instead of holding (T*B, *) whole in VMEM (v7x: 64 MiB).
        for t in range(T):
            r0 = t * B
            gates = gx[r0:r0 + B, :] + jnp.dot(
                h, whh, preferred_element_type=jnp.float32)             # (B, 4H)
            # Activate the full 128-lane vreg once, then take H-wide views.
            sg = jax.nn.sigmoid(gates)
            tg = jnp.tanh(gates)
            i_g = sg[:, 0:H]
            f_g = sg[:, H:2 * H]
            g_g = tg[:, 2 * H:3 * H]
            o_g = sg[:, 3 * H:4 * H]
            c_new = f_g * c + i_g * g_g
            h_new = o_g * jnp.tanh(c_new)

            m = keep[r0:r0 + B, :]              # (B, 1) bool: t < length
            h = jnp.where(m, h_new, h)          # packed-seq: state frozen past len
            c = jnp.where(m, c_new, c)
            y_sc[r0:r0 + B, :] = jnp.where(m, h_new, 0.0)   # padded steps -> 0
        hn_ref[layer] = h
        cn_ref[layer] = c
        y = y_sc[...]                           # next layer input, (T*B, H)

    # ---------- second pass through the same BatchNorm + logits_fc ----------
    yn = _batchnorm(y, gamma, beta)
    # TODO(synk): nn.Dropout(0.1) is stochastic; applied as identity here.
    logits_ref[...] = jnp.dot(yn, w_fc_ref[...],
                              preferred_element_type=jnp.float32) + b_fc_ref[...]


# ------------------------------ model wrapper -------------------------------

def init_params(key, input_size, hidden_size, num_classes, n_layers):
    ks = list(jax.random.split(key, 4 + 4 * n_layers))
    it = iter(ks)

    def unif(k, shape, bound):
        return jax.random.uniform(k, shape, jnp.float32, -bound, bound)

    p = {}
    be = 1.0 / (input_size ** 0.5)
    p["w_enc"] = unif(next(it), (input_size, hidden_size), be)
    p["b_enc"] = unif(next(it), (1, hidden_size), be)
    # BatchNorm1d default init
    p["bn_gamma"] = jnp.ones((1, hidden_size), jnp.float32)
    p["bn_beta"] = jnp.zeros((1, hidden_size), jnp.float32)

    bh = 1.0 / (hidden_size ** 0.5)
    wih, whh, bias = [], [], []
    for _ in range(n_layers):
        wih.append(unif(next(it), (hidden_size, 4 * hidden_size), bh))
        whh.append(unif(next(it), (hidden_size, 4 * hidden_size), bh))
        # combined bias = b_ih + b_hh (sum of two independent uniforms)
        bias.append(unif(next(it), (1, 4 * hidden_size), bh)
                    + unif(next(it), (1, 4 * hidden_size), bh))
    p["wih"] = jnp.stack(wih)     # (n_layers, H, 4H)
    p["whh"] = jnp.stack(whh)     # (n_layers, H, 4H)
    p["bias"] = jnp.stack(bias)   # (n_layers, 1, 4H)

    p["w_fc"] = unif(next(it), (hidden_size, num_classes), bh)
    p["b_fc"] = unif(next(it), (1, num_classes), bh)
    return p


def rnn_forward(params, input_sequences, input_sequences_lengths, hidden=None):
    """Mirrors RNN.forward.  input_sequences: (T, B, input_size) float32."""
    T, B, I = input_sequences.shape
    H = params["w_enc"].shape[1]
    C = params["w_fc"].shape[1]
    n_layers = params["wih"].shape[0]

    x2d = input_sequences.reshape(T * B, I)
    # pack_padded_sequence semantics via a per-(t, b) validity mask.
    mask = (jnp.arange(T, dtype=jnp.int32)[:, None]
            < input_sequences_lengths[None, :]).astype(jnp.float32)      # (T, B)
    mask2d = mask.reshape(T * B, 1)

    if hidden is None:
        h0 = jnp.zeros((n_layers, B, H), jnp.float32)
        c0 = jnp.zeros((n_layers, B, H), jnp.float32)
    else:
        h0, c0 = hidden

    logits2d, h_n, c_n = pl.pallas_call(
        functools.partial(fused_rnn_kernel, seq_len=T, batch=B),
        out_shape=(
            jax.ShapeDtypeStruct((T * B, C), jnp.float32),
            jax.ShapeDtypeStruct((n_layers, B, H), jnp.float32),
            jax.ShapeDtypeStruct((n_layers, B, H), jnp.float32),
        ),
        in_specs=[_vmem()] * 13,
        out_specs=(_vmem(), _vmem(), _vmem()),
        scratch_shapes=[pltpu.VMEM((T * B, H), jnp.float32)],
    )(x2d, params["w_enc"], params["b_enc"], params["bn_gamma"],
      params["bn_beta"], params["wih"], params["whh"], params["bias"],
      h0, c0, mask2d, params["w_fc"], params["b_fc"])

    logits = jnp.transpose(logits2d.reshape(T, B, C), (1, 0, 2))          # (B, T, C)
    neg_logits = 1.0 - logits
    binary_logits = jnp.stack((logits, neg_logits), axis=3)               # (B, T, C, 2)
    logits_flatten = binary_logits.reshape(-1, 2)
    return logits_flatten, (h_n, c_n)


# ---------------------------------- main -------------------------------------

if __name__ == "__main__":
    T, B = 8, 2
    input_size, hidden_size, num_classes, n_layers = 16, 32, 16, 2

    key = jax.random.PRNGKey(0)
    k_param, k_x = jax.random.split(key)
    params = init_params(k_param, input_size, hidden_size, num_classes, n_layers)

    x = jax.random.uniform(k_x, (T, B, input_size), jnp.float32)
    lengths = jnp.array([8, 5], dtype=jnp.int32)   # descending, like pack_padded

    forward = jax.jit(rnn_forward)
    logits_flat, (h_n, c_n) = forward(params, x, lengths)
    jax.block_until_ready((logits_flat, h_n, c_n))

    assert logits_flat.shape == (B * T * num_classes, 2)
    assert h_n.shape == (n_layers, B, hidden_size)
    assert c_n.shape == (n_layers, B, hidden_size)
    print("KERNEL_OK")
</pallas_src>

<mosaic_0001>
module attributes {stable_mosaic.version = 11 : i64} {
  func.func @fused_rnn_kernel(%arg0: memref<16x16xf32, #tpu.memory_space<vmem>>, %arg1: memref<16x32xf32, #tpu.memory_space<vmem>>, %arg2: memref<1x32xf32, #tpu.memory_space<vmem>>, %arg3: memref<1x32xf32, #tpu.memory_space<vmem>>, %arg4: memref<1x32xf32, #tpu.memory_space<vmem>>, %arg5: memref<2x32x128xf32, #tpu.memory_space<vmem>>, %arg6: memref<2x32x128xf32, #tpu.memory_space<vmem>>, %arg7: memref<2x1x128xf32, #tpu.memory_space<vmem>>, %arg8: memref<2x2x32xf32, #tpu.memory_space<vmem>>, %arg9: memref<2x2x32xf32, #tpu.memory_space<vmem>>, %arg10: memref<16x1xf32, #tpu.memory_space<vmem>>, %arg11: memref<32x16xf32, #tpu.memory_space<vmem>>, %arg12: memref<1x16xf32, #tpu.memory_space<vmem>>, %arg13: memref<16x16xf32, #tpu.memory_space<vmem>>, %arg14: memref<2x2x32xf32, #tpu.memory_space<vmem>>, %arg15: memref<2x2x32xf32, #tpu.memory_space<vmem>>, %arg16: memref<16x32xf32, #tpu.memory_space<vmem>>) attributes {dimension_semantics = [], scalar_prefetch = 0 : i64, scratch_operands = 1 : i64, tpu.core_type = #tpu.core_type<tc>} {
    %c0 = arith.constant 0 : index
    %c0_0 = arith.constant 0 : index
    %0 = vector.load %arg3[%c0, %c0_0] : memref<1x32xf32, #tpu.memory_space<vmem>>, vector<1x32xf32>
    %c0_1 = arith.constant 0 : index
    %c0_2 = arith.constant 0 : index
    %1 = vector.load %arg4[%c0_1, %c0_2] : memref<1x32xf32, #tpu.memory_space<vmem>>, vector<1x32xf32>
    %c0_3 = arith.constant 0 : index
    %c0_4 = arith.constant 0 : index
    %2 = vector.load %arg0[%c0_3, %c0_4] : memref<16x16xf32, #tpu.memory_space<vmem>>, vector<16x16xf32>
    %c0_5 = arith.constant 0 : index
    %c0_6 = arith.constant 0 : index
    %3 = vector.load %arg1[%c0_5, %c0_6] : memref<16x32xf32, #tpu.memory_space<vmem>>, vector<16x32xf32>
    %cst = arith.constant dense<0.000000e+00> : vector<16x32xf32>
    %4 = tpu.matmul %2, %3, %cst {dimension_numbers = #tpu.dot_dimension_numbers<[1], [0], [0], [1], [0, 0, 1, 1], [], []>} : vector<16x16xf32>, vector<16x32xf32>, vector<16x32xf32> -> vector<16x32xf32>
    %c0_7 = arith.constant 0 : index
    %c0_8 = arith.constant 0 : index
    %5 = vector.load %arg2[%c0_7, %c0_8] : memref<1x32xf32, #tpu.memory_space<vmem>>, vector<1x32xf32>
    %6 = vector.broadcast %5 : vector<1x32xf32> to vector<16x32xf32>
    %7 = arith.addf %4, %6 : vector<16x32xf32>
    %cst_9 = arith.constant dense<0.000000e+00> : vector<32xf32>
    %8 = vector.multi_reduction <add>, %7, %cst_9 [0] : vector<16x32xf32> to vector<32xf32>
    %9 = vector.shape_cast %8 : vector<32xf32> to vector<1x32xf32>
    %cst_10 = arith.constant 1.600000e+01 : f32
    %10 = vector.broadcast %cst_10 : f32 to vector<1x32xf32>
    %11 = arith.divf %9, %10 : vector<1x32xf32>
    %12 = vector.broadcast %11 : vector<1x32xf32> to vector<16x32xf32>
    %13 = arith.subf %7, %12 : vector<16x32xf32>
    %14 = arith.mulf %13, %13 : vector<16x32xf32>
    %cst_11 = arith.constant dense<0.000000e+00> : vector<32xf32>
    %15 = vector.multi_reduction <add>, %14, %cst_11 [0] : vector<16x32xf32> to vector<32xf32>
    %16 = vector.shape_cast %15 : vector<32xf32> to vector<1x32xf32>
    %cst_12 = arith.constant 1.600000e+01 : f32
    %17 = vector.broadcast %cst_12 : f32 to vector<1x32xf32>
    %18 = arith.divf %16, %17 : vector<1x32xf32>
    %19 = vector.broadcast %11 : vector<1x32xf32> to vector<16x32xf32>
    %20 = arith.subf %7, %19 : vector<16x32xf32>
    %cst_13 = arith.constant 9.99999974E-6 : f32
    %21 = vector.broadcast %cst_13 : f32 to vector<1x32xf32>
    %22 = arith.addf %18, %21 : vector<1x32xf32>
    %23 = math.rsqrt %22 : vector<1x32xf32>
    %24 = vector.broadcast %23 : vector<1x32xf32> to vector<16x32xf32>
    %25 = arith.mulf %20, %24 : vector<16x32xf32>
    %26 = vector.broadcast %0 : vector<1x32xf32> to vector<16x32xf32>
    %27 = arith.mulf %25, %26 : vector<16x32xf32>
    %28 = vector.broadcast %1 : vector<1x32xf32> to vector<16x32xf32>
    %29 = arith.addf %27, %28 : vector<16x32xf32>
    %c0_14 = arith.constant 0 : index
    %c0_15 = arith.constant 0 : index
    %30 = vector.load %arg10[%c0_14, %c0_15] : memref<16x1xf32, #tpu.memory_space<vmem>>, vector<16x1xf32>
    %cst_16 = arith.constant 0.000000e+00 : f32
    %31 = vector.broadcast %cst_16 : f32 to vector<16x1xf32>
    %32 = arith.cmpf ogt, %30, %31 : vector<16x1xf32>
    %c0_17 = arith.constant 0 : index
    %c0_18 = arith.constant 0 : index
    %c0_19 = arith.constant 0 : index
    %33 = vector.load %arg5[%c0_17, %c0_18, %c0_19] : memref<2x32x128xf32, #tpu.memory_space<vmem>>, vector<1x32x128xf32>
    %34 = vector.shape_cast %33 : vector<1x32x128xf32> to vector<32x128xf32>
    %c0_20 = arith.constant 0 : index
    %c0_21 = arith.constant 0 : index
    %c0_22 = arith.constant 0 : index
    %35 = vector.load %arg6[%c0_20, %c0_21, %c0_22] : memref<2x32x128xf32, #tpu.memory_space<vmem>>, vector<1x32x128xf32>
    %36 = vector.shape_cast %35 : vector<1x32x128xf32> to vector<32x128xf32>
    %c0_23 = arith.constant 0 : index
    %c0_24 = arith.constant 0 : index
    %c0_25 = arith.constant 0 : index
    %37 = vector.load %arg7[%c0_23, %c0_24, %c0_25] : memref<2x1x128xf32, #tpu.memory_space<vmem>>, vector<1x1x128xf32>
    %38 = vector.shape_cast %37 : vector<1x1x128xf32> to vector<1x128xf32>
    %cst_26 = arith.constant dense<0.000000e+00> : vector<16x128xf32>
    %39 = tpu.matmul %29, %34, %cst_26 {dimension_numbers = #tpu.dot_dimension_numbers<[1], [0], [0], [1], [0, 0, 1, 1], [], []>} : vector<16x32xf32>, vector<32x128xf32>, vector<16x128xf32> -> vector<16x128xf32>
    %40 = vector.broadcast %38 : vector<1x128xf32> to vector<16x128xf32>
    %41 = arith.addf %39, %40 : vector<16x128xf32>
    %c0_27 = arith.constant 0 : index
    %c0_28 = arith.constant 0 : index
    %c0_29 = arith.constant 0 : index
    %42 = vector.load %arg8[%c0_27, %c0_28, %c0_29] : memref<2x2x32xf32, #tpu.memory_space<vmem>>, vector<1x2x32xf32>
    %43 = vector.shape_cast %42 : vector<1x2x32xf32> to vector<2x32xf32>
    %c0_30 = arith.constant 0 : index
    %c0_31 = arith.constant 0 : index
    %c0_32 = arith.constant 0 : index
    %44 = vector.load %arg9[%c0_30, %c0_31, %c0_32] : memref<2x2x32xf32, #tpu.memory_space<vmem>>, vector<1x2x32xf32>
    %45 = vector.shape_cast %44 : vector<1x2x32xf32> to vector<2x32xf32>
    %46 = vector.extract_strided_slice %41 {offsets = [0, 0], sizes = [2, 128], strides = [1, 1]} : vector<16x128xf32> to vector<2x128xf32>
    %cst_33 = arith.constant dense<0.000000e+00> : vector<2x128xf32>
    %47 = tpu.matmul %43, %36, %cst_33 {dimension_numbers = #tpu.dot_dimension_numbers<[1], [0], [0], [1], [0, 0, 1, 1], [], []>} : vector<2x32xf32>, vector<32x128xf32>, vector<2x128xf32> -> vector<2x128xf32>
    %48 = arith.addf %46, %47 : vector<2x128xf32>
    %49 = arith.negf %48 : vector<2x128xf32>
    %50 = math.exp %49 : vector<2x128xf32>
    %cst_34 = arith.constant 1.000000e+00 : f32
    %51 = vector.broadcast %cst_34 : f32 to vector<2x128xf32>
    %52 = arith.addf %51, %50 : vector<2x128xf32>
    %53 = arith.divf %51, %52 : vector<2x128xf32>
    %54 = math.tanh %48 : vector<2x128xf32>
    %55 = vector.extract_strided_slice %53 {offsets = [0, 0], sizes = [2, 32], strides = [1, 1]} : vector<2x128xf32> to vector<2x32xf32>
    %56 = vector.extract_strided_slice %53 {offsets = [0, 32], sizes = [2, 32], strides = [1, 1]} : vector<2x128xf32> to vector<2x32xf32>
    %57 = vector.extract_strided_slice %54 {offsets = [0, 64], sizes = [2, 32], strides = [1, 1]} : vector<2x128xf32> to vector<2x32xf32>
    %58 = vector.extract_strided_slice %53 {offsets = [0, 96], sizes = [2, 32], strides = [1, 1]} : vector<2x128xf32> to vector<2x32xf32>
    %59 = arith.mulf %56, %45 : vector<2x32xf32>
    %60 = arith.mulf %55, %57 : vector<2x32xf32>
    %61 = arith.addf %59, %60 : vector<2x32xf32>
    %62 = math.tanh %61 : vector<2x32xf32>
    %63 = arith.mulf %58, %62 : vector<2x32xf32>
    %64 = vector.extract_strided_slice %32 {offsets = [0, 0], sizes = [2, 1], strides = [1, 1]} : vector<16x1xi1> to vector<2x1xi1>
    %65 = vector.shape_cast %64 : vector<2x1xi1> to vector<2x1xi1>
    %66 = vector.broadcast %65 : vector<2x1xi1> to vector<2x32xi1>
    %67 = arith.select %66, %63, %43 : vector<2x32xi1>, vector<2x32xf32>
    %68 = vector.shape_cast %64 : vector<2x1xi1> to vector<2x1xi1>
    %69 = vector.broadcast %68 : vector<2x1xi1> to vector<2x32xi1>
    %70 = arith.select %69, %61, %45 : vector<2x32xi1>, vector<2x32xf32>
    %cst_35 = arith.constant 0.000000e+00 : f32
    %71 = vector.shape_cast %64 : vector<2x1xi1> to vector<2x1xi1>
    %72 = vector.broadcast %71 : vector<2x1xi1> to vector<2x32xi1>
    %73 = vector.broadcast %cst_35 : f32 to vector<2x32xf32>
    %74 = arith.select %72, %63, %73 : vector<2x32xi1>, vector<2x32xf32>
    %c0_36 = arith.constant 0 : index
    %c0_37 = arith.constant 0 : index
    %75 = vector.load %arg16[%c0_36, %c0_37] : memref<16x32xf32, #tpu.memory_space<vmem>>, vector<2x32xf32>
    tpu.vector_store %arg16[%c0_36, %c0_37], %74 {strides = array<i32>} : memref<16x32xf32, #tpu.memory_space<vmem>>, vector<2x32xf32>,
    %76 = vector.extract_strided_slice %41 {offsets = [2, 0], sizes = [2, 128], strides = [1, 1]} : vector<16x128xf32> to vector<2x128xf32>
    %cst_38 = arith.constant dense<0.000000e+00> : vector<2x128xf32>
    %77 = tpu.matmul %67, %36, %cst_38 {dimension_numbers = #tpu.dot_dimension_numbers<[1], [0], [0], [1], [0, 0, 1, 1], [], []>} : vector<2x32xf32>, vector<32x128xf32>, vector<2x128xf32> -> vector<2x128xf32>
    %78 = arith.addf %76, %77 : vector<2x128xf32>
    %79 = arith.negf %78 : vector<2x128xf32>
    %80 = math.exp %79 : vector<2x128xf32>
    %cst_39 = arith.constant 1.000000e+00 : f32
    %81 = vector.broadcast %cst_39 : f32 to vector<2x128xf32>
    %82 = arith.addf %81, %80 : vector<2x128xf32>
    %83 = arith.divf %81, %82 : vector<2x128xf32>
    %84 = math.tanh %78 : vector<2x128xf32>
    %85 = vector.extract_strided_slice %83 {offsets = [0, 0], sizes = [2, 32], strides = [1, 1]} : vector<2x128xf32> to vector<2x32xf32>
    %86 = vector.extract_strided_slice %83 {offsets = [0, 32], sizes = [2, 32], strides = [1, 1]} : vector<2x128xf32> to vector<2x32xf32>
    %87 = vector.extract_strided_slice %84 {offsets = [0, 64], sizes = [2, 32], strides = [1, 1]} : vector<2x128xf32> to vector<2x32xf32>
    %88 = vector.extract_strided_slice %83 {offsets = [0, 96], sizes = [2, 32], strides = [1, 1]} : vector<2x128xf32> to vector<2x32xf32>
    %89 = arith.mulf %86, %70 : vector<2x32xf32>
    %90 = arith.mulf %85, %87 : vector<2x32xf32>
    %91 = arith.addf %89, %90 : vector<2x32xf32>
    %92 = math.tanh %91 : vector<2x32xf32>
    %93 = arith.mulf %88, %92 : vector<2x32xf32>
    %94 = vector.extract_strided_slice %32 {offsets = [2, 0], sizes = [2, 1], strides = [1, 1]} : vector<16x1xi1> to vector<2x1xi1>
    %95 = vector.shape_cast %94 : vector<2x1xi1> to vector<2x1xi1>
    %96 = vector.broadcast %95 : vector<2x1xi1> to vector<2x32xi1>
    %97 = arith.select %96, %93, %67 : vector<2x32xi1>, vector<2x32xf32>
    %98 = vector.shape_cast %94 : vector<2x1xi1> to vector<2x1xi1>
    %99 = vector.broadcast %98 : vector<2x1xi1> to vector<2x32xi1>
    %100 = arith.select %99, %91, %70 : vector<2x32xi1>, vector<2x32xf32>
    %cst_40 = arith.constant 0.000000e+00 : f32
    %101 = vector.shape_cast %94 : vector<2x1xi1> to vector<2x1xi1>
    %102 = vector.broadcast %101 : vector<2x1xi1> to vector<2x32xi1>
    %103 = vector.broadcast %cst_40 : f32 to vector<2x32xf32>
    %104 = arith.select %102, %93, %103 : vector<2x32xi1>, vector<2x32xf32>
    %c2 = arith.constant 2 : index
    %c0_41 = arith.constant 0 : index
    %105 = vector.load %arg16[%c2, %c0_41] : memref<16x32xf32, #tpu.memory_space<vmem>>, vector<2x32xf32>
    tpu.vector_store %arg16[%c2, %c0_41], %104 {strides = array<i32>} : memref<16x32xf32, #tpu.memory_space<vmem>>, vector<2x32xf32>,
    %106 = vector.extract_strided_slice %41 {offsets = [4, 0], sizes = [2, 128], strides = [1, 1]} : vector<16x128xf32> to vector<2x128xf32>
    %cst_42 = arith.constant dense<0.000000e+00> : vector<2x128xf32>
    %107 = tpu.matmul %97, %36, %cst_42 {dimension_numbers = #tpu.dot_dimension_numbers<[1], [0], [0], [1], [0, 0, 1, 1], [], []>} : vector<2x32xf32>, vector<32x128xf32>, vector<2x128xf32> -> vector<2x128xf32>
    %108 = arith.addf %106, %107 : vector<2x128xf32>
    %109 = arith.negf %108 : vector<2x128xf32>
    %110 = math.exp %109 : vector<2x128xf32>
    %cst_43 = arith.constant 1.000000e+00 : f32
    %111 = vector.broadcast %cst_43 : f32 to vector<2x128xf32>
    %112 = arith.addf %111, %110 : vector<2x128xf32>
    %113 = arith.divf %111, %112 : vector<2x128xf32>
    %114 = math.tanh %108 : vector<2x128xf32>
    %115 = vector.extract_strided_slice %113 {offsets = [0, 0], sizes = [2, 32], strides = [1, 1]} : vector<2x128xf32> to vector<2x32xf32>
    %116 = vector.extract_strided_slice %113 {offsets = [0, 32], sizes = [2, 32], strides = [1, 1]} : vector<2x128xf32> to vector<2x32xf32>
    %117 = vector.extract_strided_slice %114 {offsets = [0, 64], sizes = [2, 32], strides = [1, 1]} : vector<2x128xf32> to vector<2x32xf32>
    %118 = vector.extract_strided_slice %113 {offsets = [0, 96], sizes = [2, 32], strides = [1, 1]} : vector<2x128xf32> to vector<2x32xf32>
    %119 = arith.mulf %116, %100 : vector<2x32xf32>
    %120 = arith.mulf %115, %117 : vector<2x32xf32>
    %121 = arith.addf %119, %120 : vector<2x32xf32>
    %122 = math.tanh %121 : vector<2x32xf32>
    %123 = arith.mulf %118, %122 : vector<2x32xf32>
    %124 = vector.extract_strided_slice %32 {offsets = [4, 0], sizes = [2, 1], strides = [1, 1]} : vector<16x1xi1> to vector<2x1xi1>
    %125 = vector.shape_cast %124 : vector<2x1xi1> to vector<2x1xi1>
    %126 = vector.broadcast %125 : vector<2x1xi1> to vector<2x32xi1>
    %127 = arith.select %126, %123, %97 : vector<2x32xi1>, vector<2x32xf32>
    %128 = vector.shape_cast %124 : vector<2x1xi1> to vector<2x1xi1>
    %129 = vector.broadcast %128 : vector<2x1xi1> to vector<2x32xi1>
    %130 = arith.select %129, %121, %100 : vector<2x32xi1>, vector<2x32xf32>
    %cst_44 = arith.constant 0.000000e+00 : f32
    %131 = vector.shape_cast %124 : vector<2x1xi1> to vector<2x1xi1>
    %132 = vector.broadcast %131 : vector<2x1xi1> to vector<2x32xi1>
    %133 = vector.broadcast %cst_44 : f32 to vector<2x32xf32>
    %134 = arith.select %132, %123, %133 : vector<2x32xi1>, vector<2x32xf32>
    %c4 = arith.constant 4 : index
    %c0_45 = arith.constant 0 : index
    %135 = vector.load %arg16[%c4, %c0_45] : memref<16x32xf32, #tpu.memory_space<vmem>>, vector<2x32xf32>
    tpu.vector_store %arg16[%c4, %c0_45], %134 {strides = array<i32>} : memref<16x32xf32, #tpu.memory_space<vmem>>, vector<2x32xf32>,
    %136 = vector.extract_strided_slice %41 {offsets = [6, 0], sizes = [2, 128], strides = [1, 1]} : vector<16x128xf32> to vector<2x128xf32>
    %cst_46 = arith.constant dense<0.000000e+00> : vector<2x128xf32>
    %137 = tpu.matmul %127, %36, %cst_46 {dimension_numbers = #tpu.dot_dimension_numbers<[1], [0], [0], [1], [0, 0, 1, 1], [], []>} : vector<2x32xf32>, vector<32x128xf32>, vector<2x128xf32> -> vector<2x128xf32>
    %138 = arith.addf %136, %137 : vector<2x128xf32>
    %139 = arith.negf %138 : vector<2x128xf32>
    %140 = math.exp %139 : vector<2x128xf32>
    %cst_47 = arith.constant 1.000000e+00 : f32
    %141 = vector.broadcast %cst_47 : f32 to vector<2x128xf32>
    %142 = arith.addf %141, %140 : vector<2x128xf32>
    %143 = arith.divf %141, %142 : vector<2x128xf32>
    %144 = math.tanh %138 : vector<2x128xf32>
    %145 = vector.extract_strided_slice %143 {offsets = [0, 0], sizes = [2, 32], strides = [1, 1]} : vector<2x128xf32> to vector<2x32xf32>
    %146 = vector.extract_strided_slice %143 {offsets = [0, 32], sizes = [2, 32], strides = [1, 1]} : vector<2x128xf32> to vector<2x32xf32>
    %147 = vector.extract_strided_slice %144 {offsets = [0, 64], sizes = [2, 32], strides = [1, 1]} : vector<2x128xf32> to vector<2x32xf32>
    %148 = vector.extract_strided_slice %143 {offsets = [0, 96], sizes = [2, 32], strides = [1, 1]} : vector<2x128xf32> to vector<2x32xf32>
    %149 = arith.mulf %146, %130 : vector<2x32xf32>
    %150 = arith.mulf %145, %147 : vector<2x32xf32>
    %151 = arith.addf %149, %150 : vector<2x32xf32>
    %152 = math.tanh %151 : vector<2x32xf32>
    %153 = arith.mulf %148, %152 : vector<2x32xf32>
    %154 = vector.extract_strided_slice %32 {offsets = [6, 0], sizes = [2, 1], strides = [1, 1]} : vector<16x1xi1> to vector<2x1xi1>
    %155 = vector.shape_cast %154 : vector<2x1xi1> to vector<2x1xi1>
    %156 = vector.broadcast %155 : vector<2x1xi1> to vector<2x32xi1>
    %157 = arith.select %156, %153, %127 : vector<2x32xi1>, vector<2x32xf32>
    %158 = vector.shape_cast %154 : vector<2x1xi1> to vector<2x1xi1>
    %159 = vector.broadcast %158 : vector<2x1xi1> to vector<2x32xi1>
    %160 = arith.select %159, %151, %130 : vector<2x32xi1>, vector<2x32xf32>
    %cst_48 = arith.constant 0.000000e+00 : f32
    %161 = vector.shape_cast %154 : vector<2x1xi1> to vector<2x1xi1>
    %162 = vector.broadcast %161 : vector<2x1xi1> to vector<2x32xi1>
    %163 = vector.broadcast %cst_48 : f32 to vector<2x32xf32>
    %164 = arith.select %162, %153, %163 : vector<2x32xi1>, vector<2x32xf32>
    %c6 = arith.constant 6 : index
    %c0_49 = arith.constant 0 : index
    %165 = vector.load %arg16[%c6, %c0_49] : memref<16x32xf32, #tpu.memory_space<vmem>>, vector<2x32xf32>
    tpu.vector_store %arg16[%c6, %c0_49], %164 {strides = array<i32>} : memref<16x32xf32, #tpu.memory_space<vmem>>, vector<2x32xf32>,
    %166 = vector.extract_strided_slice %41 {offsets = [8, 0], sizes = [2, 128], strides = [1, 1]} : vector<16x128xf32> to vector<2x128xf32>
    %cst_50 = arith.constant dense<0.000000e+00> : vector<2x128xf32>
    %167 = tpu.matmul %157, %36, %cst_50 {dimension_numbers = #tpu.dot_dimension_numbers<[1], [0], [0], [1], [0, 0, 1, 1], [], []>} : vector<2x32xf32>, vector<32x128xf32>, vector<2x128xf32> -> vector<2x128xf32>
    %168 = arith.addf %166, %167 : vector<2x128xf32>
    %169 = arith.negf %168 : vector<2x128xf32>
    %170 = math.exp %169 : vector<2x128xf32>
    %cst_51 = arith.constant 1.000000e+00 : f32
    %171 = vector.broadcast %cst_51 : f32 to vector<2x128xf32>
    %172 = arith.addf %171, %170 : vector<2x128xf32>
    %173 = arith.divf %171, %172 : vector<2x128xf32>
    %174 = math.tanh %168 : vector<2x128xf32>
    %175 = vector.extract_strided_slice %173 {offsets = [0, 0], sizes = [2, 32], strides = [1, 1]} : vector<2x128xf32> to vector<2x32xf32>
    %176 = vector.extract_strided_slice %173 {offsets = [0, 32], sizes = [2, 32], strides = [1, 1]} : vector<2x128xf32> to vector<2x32xf32>
    %177 = vector.extract_strided_slice %174 {offsets = [0, 64], sizes = [2, 32], strides = [1, 1]} : vector<2x128xf32> to vector<2x32xf32>
    %178 = vector.extract_strided_slice %173 {offsets = [0, 96], sizes = [2, 32], strides = [1, 1]} : vector<2x128xf32> to vector<2x32xf32>
    %179 = arith.mulf %176, %160 : vector<2x32xf32>
    %180 = arith.mulf %175, %177 : vector<2x32xf32>
    %181 = arith.addf %179, %180 : vector<2x32xf32>
    %182 = math.tanh %181 : vector<2x32xf32>
    %183 = arith.mulf %178, %182 : vector<2x32xf32>
    %184 = vector.extract_strided_slice %32 {offsets = [8, 0], sizes = [2, 1], strides = [1, 1]} : vector<16x1xi1> to vector<2x1xi1>
    %185 = vector.shape_cast %184 : vector<2x1xi1> to vector<2x1xi1>
    %186 = vector.broadcast %185 : vector<2x1xi1> to vector<2x32xi1>
    %187 = arith.select %186, %183, %157 : vector<2x32xi1>, vector<2x32xf32>
    %188 = vector.shape_cast %184 : vector<2x1xi1> to vector<2x1xi1>
    %189 = vector.broadcast %188 : vector<2x1xi1> to vector<2x32xi1>
    %190 = arith.select %189, %181, %160 : vector<2x32xi1>, vector<2x32xf32>
    %cst_52 = arith.constant 0.000000e+00 : f32
    %191 = vector.shape_cast %184 : vector<2x1xi1> to vector<2x1xi1>
    %192 = vector.broadcast %191 : vector<2x1xi1> to vector<2x32xi1>
    %193 = vector.broadcast %cst_52 : f32 to vector<2x32xf32>
    %194 = arith.select %192, %183, %193 : vector<2x32xi1>, vector<2x32xf32>
    %c8 = arith.constant 8 : index
    %c0_53 = arith.constant 0 : index
    %195 = vector.load %arg16[%c8, %c0_53] : memref<16x32xf32, #tpu.memory_space<vmem>>, vector<2x32xf32>
    tpu.vector_store %arg16[%c8, %c0_53], %194 {strides = array<i32>} : memref<16x32xf32, #tpu.memory_space<vmem>>, vector<2x32xf32>,
    %196 = vector.extract_strided_slice %41 {offsets = [10, 0], sizes = [2, 128], strides = [1, 1]} : vector<16x128xf32> to vector<2x128xf32>
    %cst_54 = arith.constant dense<0.000000e+00> : vector<2x128xf32>
    %197 = tpu.matmul %187, %36, %cst_54 {dimension_numbers = #tpu.dot_dimension_numbers<[1], [0], [0], [1], [0, 0, 1, 1], [], []>} : vector<2x32xf32>, vector<32x128xf32>, vector<2x128xf32> -> vector<2x128xf32>
    %198 = arith.addf %196, %197 : vector<2x128xf32>
    %199 = arith.negf %198 : vector<2x128xf32>
    %200 = math.exp %199 : vector<2x128xf32>
    %cst_55 = arith.constant 1.000000e+00 : f32
    %201 = vector.broadcast %cst_55 : f32 to vector<2x128xf32>
    %202 = arith.addf %201, %200 : vector<2x128xf32>
    %203 = arith.divf %201, %202 : vector<2x128xf32>
    %204 = math.tanh %198 : vector<2x128xf32>
    %205 = vector.extract_strided_slice %203 {offsets = [0, 0], sizes = [2, 32], strides = [1, 1]} : vector<2x128xf32> to vector<2x32xf32>
    %206 = vector.extract_strided_slice %203 {offsets = [0, 32], sizes = [2, 32], strides = [1, 1]} : vector<2x128xf32> to vector<2x32xf32>
    %207 = vector.extract_strided_slice %204 {offsets = [0, 64], sizes = [2, 32], strides = [1, 1]} : vector<2x128xf32> to vector<2x32xf32>
    %208 = vector.extract_strided_slice %203 {offsets = [0, 96], sizes = [2, 32], strides = [1, 1]} : vector<2x128xf32> to vector<2x32xf32>
    %209 = arith.mulf %206, %190 : vector<2x32xf32>
    %210 = arith.mulf %205, %207 : vector<2x32xf32>
    %211 = arith.addf %209, %210 : vector<2x32xf32>
    %212 = math.tanh %211 : vector<2x32xf32>
    %213 = arith.mulf %208, %212 : vector<2x32xf32>
    %214 = vector.extract_strided_slice %32 {offsets = [10, 0], sizes = [2, 1], strides = [1, 1]} : vector<16x1xi1> to vector<2x1xi1>
    %215 = vector.shape_cast %214 : vector<2x1xi1> to vector<2x1xi1>
    %216 = vector.broadcast %215 : vector<2x1xi1> to vector<2x32xi1>
    %217 = arith.select %216, %213, %187 : vector<2x32xi1>, vector<2x32xf32>
    %218 = vector.shape_cast %214 : vector<2x1xi1> to vector<2x1xi1>
    %219 = vector.broadcast %218 : vector<2x1xi1> to vector<2x32xi1>
    %220 = arith.select %219, %211, %190 : vector<2x32xi1>, vector<2x32xf32>
    %cst_56 = arith.constant 0.000000e+00 : f32
    %221 = vector.shape_cast %214 : vector<2x1xi1> to vector<2x1xi1>
    %222 = vector.broadcast %221 : vector<2x1xi1> to vector<2x32xi1>
    %223 = vector.broadcast %cst_56 : f32 to vector<2x32xf32>
    %224 = arith.select %222, %213, %223 : vector<2x32xi1>, vector<2x32xf32>
    %c10 = arith.constant 10 : index
    %c0_57 = arith.constant 0 : index
    %225 = vector.load %arg16[%c10, %c0_57] : memref<16x32xf32, #tpu.memory_space<vmem>>, vector<2x32xf32>
    tpu.vector_store %arg16[%c10, %c0_57], %224 {strides = array<i32>} : memref<16x32xf32, #tpu.memory_space<vmem>>, vector<2x32xf32>,
    %226 = vector.extract_strided_slice %41 {offsets = [12, 0], sizes = [2, 128], strides = [1, 1]} : vector<16x128xf32> to vector<2x128xf32>
    %cst_58 = arith.constant dense<0.000000e+00> : vector<2x128xf32>
    %227 = tpu.matmul %217, %36, %cst_58 {dimension_numbers = #tpu.dot_dimension_numbers<[1], [0], [0], [1], [0, 0, 1, 1], [], []>} : vector<2x32xf32>, vector<32x128xf32>, vector<2x128xf32> -> vector<2x128xf32>
    %228 = arith.addf %226, %227 : vector<2x128xf32>
    %229 = arith.negf %228 : vector<2x128xf32>
    %230 = math.exp %229 : vector<2x128xf32>
    %cst_59 = arith.constant 1.000000e+00 : f32
    %231 = vector.broadcast %cst_59 : f32 to vector<2x128xf32>
    %232 = arith.addf %231, %230 : vector<2x128xf32>
    %233 = arith.divf %231, %232 : vector<2x128xf32>
    %234 = math.tanh %228 : vector<2x128xf32>
    %235 = vector.extract_strided_slice %233 {offsets = [0, 0], sizes = [2, 32], strides = [1, 1]} : vector<2x128xf32> to vector<2x32xf32>
    %236 = vector.extract_strided_slice %233 {offsets = [0, 32], sizes = [2, 32], strides = [1, 1]} : vector<2x128xf32> to vector<2x32xf32>
    %237 = vector.extract_strided_slice %234 {offsets = [0, 64], sizes = [2, 32], strides = [1, 1]} : vector<2x128xf32> to vector<2x32xf32>
    %238 = vector.extract_strided_slice %233 {offsets = [0, 96], sizes = [2, 32], strides = [1, 1]} : vector<2x128xf32> to vector<2x32xf32>
    %239 = arith.mulf %236, %220 : vector<2x32xf32>
    %240 = arith.mulf %235, %237 : vector<2x32xf32>
    %241 = arith.addf %239, %240 : vector<2x32xf32>
    %242 = math.tanh %241 : vector<2x32xf32>
    %243 = arith.mulf %238, %242 : vector<2x32xf32>
    %244 = vector.extract_strided_slice %32 {offsets = [12, 0], sizes = [2, 1], strides = [1, 1]} : vector<16x1xi1> to vector<2x1xi1>
    %245 = vector.shape_cast %244 : vector<2x1xi1> to vector<2x1xi1>
    %246 = vector.broadcast %245 : vector<2x1xi1> to vector<2x32xi1>
    %247 = arith.select %246, %243, %217 : vector<2x32xi1>, vector<2x32xf32>
    %248 = vector.shape_cast %244 : vector<2x1xi1> to vector<2x1xi1>
    %249 = vector.broadcast %248 : vector<2x1xi1> to vector<2x32xi1>
    %250 = arith.select %249, %241, %220 : vector<2x32xi1>, vector<2x32xf32>
    %cst_60 = arith.constant 0.000000e+00 : f32
    %251 = vector.shape_cast %244 : vector<2x1xi1> to vector<2x1xi1>
    %252 = vector.broadcast %251 : vector<2x1xi1> to vector<2x32xi1>
    %253 = vector.broadcast %cst_60 : f32 to vector<2x32xf32>
    %254 = arith.select %252, %243, %253 : vector<2x32xi1>, vector<2x32xf32>
    %c12 = arith.constant 12 : index
    %c0_61 = arith.constant 0 : index
    %255 = vector.load %arg16[%c12, %c0_61] : memref<16x32xf32, #tpu.memory_space<vmem>>, vector<2x32xf32>
    tpu.vector_store %arg16[%c12, %c0_61], %254 {strides = array<i32>} : memref<16x32xf32, #tpu.memory_space<vmem>>, vector<2x32xf32>,
    %256 = vector.extract_strided_slice %41 {offsets = [14, 0], sizes = [2, 128], strides = [1, 1]} : vector<16x128xf32> to vector<2x128xf32>
    %cst_62 = arith.constant dense<0.000000e+00> : vector<2x128xf32>
    %257 = tpu.matmul %247, %36, %cst_62 {dimension_numbers = #tpu.dot_dimension_numbers<[1], [0], [0], [1], [0, 0, 1, 1], [], []>} : vector<2x32xf32>, vector<32x128xf32>, vector<2x128xf32> -> vector<2x128xf32>
    %258 = arith.addf %256, %257 : vector<2x128xf32>
    %259 = arith.negf %258 : vector<2x128xf32>
    %260 = math.exp %259 : vector<2x128xf32>
    %cst_63 = arith.constant 1.000000e+00 : f32
    %261 = vector.broadcast %cst_63 : f32 to vector<2x128xf32>
    %262 = arith.addf %261, %260 : vector<2x128xf32>
    %263 = arith.divf %261, %262 : vector<2x128xf32>
    %264 = math.tanh %258 : vector<2x128xf32>
    %265 = vector.extract_strided_slice %263 {offsets = [0, 0], sizes = [2, 32], strides = [1, 1]} : vector<2x128xf32> to vector<2x32xf32>
    %266 = vector.extract_strided_slice %263 {offsets = [0, 32], sizes = [2, 32], strides = [1, 1]} : vector<2x128xf32> to vector<2x32xf32>
    %267 = vector.extract_strided_slice %264 {offsets = [0, 64], sizes = [2, 32], strides = [1, 1]} : vector<2x128xf32> to vector<2x32xf32>
    %268 = vector.extract_strided_slice %263 {offsets = [0, 96], sizes = [2, 32], strides = [1, 1]} : vector<2x128xf32> to vector<2x32xf32>
    %269 = arith.mulf %266, %250 : vector<2x32xf32>
    %270 = arith.mulf %265, %267 : vector<2x32xf32>
    %271 = arith.addf %269, %270 : vector<2x32xf32>
    %272 = math.tanh %271 : vector<2x32xf32>
    %273 = arith.mulf %268, %272 : vector<2x32xf32>
    %274 = vector.extract_strided_slice %32 {offsets = [14, 0], sizes = [2, 1], strides = [1, 1]} : vector<16x1xi1> to vector<2x1xi1>
    %275 = vector.shape_cast %274 : vector<2x1xi1> to vector<2x1xi1>
    %276 = vector.broadcast %275 : vector<2x1xi1> to vector<2x32xi1>
    %277 = arith.select %276, %273, %247 : vector<2x32xi1>, vector<2x32xf32>
    %278 = vector.shape_cast %274 : vector<2x1xi1> to vector<2x1xi1>
    %279 = vector.broadcast %278 : vector<2x1xi1> to vector<2x32xi1>
    %280 = arith.select %279, %271, %250 : vector<2x32xi1>, vector<2x32xf32>
    %cst_64 = arith.constant 0.000000e+00 : f32
    %281 = vector.shape_cast %274 : vector<2x1xi1> to vector<2x1xi1>
    %282 = vector.broadcast %281 : vector<2x1xi1> to vector<2x32xi1>
    %283 = vector.broadcast %cst_64 : f32 to vector<2x32xf32>
    %284 = arith.select %282, %273, %283 : vector<2x32xi1>, vector<2x32xf32>
    %c14 = arith.constant 14 : index
    %c0_65 = arith.constant 0 : index
    %285 = vector.load %arg16[%c14, %c0_65] : memref<16x32xf32, #tpu.memory_space<vmem>>, vector<2x32xf32>
    tpu.vector_store %arg16[%c14, %c0_65], %284 {strides = array<i32>} : memref<16x32xf32, #tpu.memory_space<vmem>>, vector<2x32xf32>,
    %c0_66 = arith.constant 0 : index
    %c0_67 = arith.constant 0 : index
    %c0_68 = arith.constant 0 : index
    %286 = vector.load %arg14[%c0_66, %c0_67, %c0_68] : memref<2x2x32xf32, #tpu.memory_space<vmem>>, vector<1x2x32xf32>
    %287 = vector.shape_cast %286 : vector<1x2x32xf32> to vector<2x32xf32>
    %288 = vector.shape_cast %277 : vector<2x32xf32> to vector<1x2x32xf32>
    tpu.vector_store %arg14[%c0_66, %c0_67, %c0_68], %288 {strides = array<i32>} : memref<2x2x32xf32, #tpu.memory_space<vmem>>, vector<1x2x32xf32>,
    %c0_69 = arith.constant 0 : index
    %c0_70 = arith.constant 0 : index
    %c0_71 = arith.constant 0 : index
    %289 = vector.load %arg15[%c0_69, %c0_70, %c0_71] : memref<2x2x32xf32, #tpu.memory_space<vmem>>, vector<1x2x32xf32>
    %290 = vector.shape_cast %289 : vector<1x2x32xf32> to vector<2x32xf32>
    %291 = vector.shape_cast %280 : vector<2x32xf32> to vector<1x2x32xf32>
    tpu.vector_store %arg15[%c0_69, %c0_70, %c0_71], %291 {strides = array<i32>} : memref<2x2x32xf32, #tpu.memory_space<vmem>>, vector<1x2x32xf32>,
    %c0_72 = arith.constant 0 : index
    %c0_73 = arith.constant 0 : index
    %292 = vector.load %arg16[%c0_72, %c0_73] : memref<16x32xf32, #tpu.memory_space<vmem>>, vector<16x32xf32>
    %c1 = arith.constant 1 : index
    %c0_74 = arith.constant 0 : index
    %c0_75 = arith.constant 0 : index
    %293 = vector.load %arg5[%c1, %c0_74, %c0_75] : memref<2x32x128xf32, #tpu.memory_space<vmem>>, vector<1x32x128xf32>
    %294 = vector.shape_cast %293 : vector<1x32x128xf32> to vector<32x128xf32>
    %c1_76 = arith.constant 1 : index
    %c0_77 = arith.constant 0 : index
    %c0_78 = arith.constant 0 : index
    %295 = vector.load %arg6[%c1_76, %c0_77, %c0_78] : memref<2x32x128xf32, #tpu.memory_space<vmem>>, vector<1x32x128xf32>
    %296 = vector.shape_cast %295 : vector<1x32x128xf32> to vector<32x128xf32>
    %c1_79 = arith.constant 1 : index
    %c0_80 = arith.constant 0 : index
    %c0_81 = arith.constant 0 : index
    %297 = vector.load %arg7[%c1_79, %c0_80, %c0_81] : memref<2x1x128xf32, #tpu.memory_space<vmem>>, vector<1x1x128xf32>
    %298 = vector.shape_cast %297 : vector<1x1x128xf32> to vector<1x128xf32>
    %cst_82 = arith.constant dense<0.000000e+00> : vector<16x128xf32>
    %299 = tpu.matmul %292, %294, %cst_82 {dimension_numbers = #tpu.dot_dimension_numbers<[1], [0], [0], [1], [0, 0, 1, 1], [], []>} : vector<16x32xf32>, vector<32x128xf32>, vector<16x128xf32> -> vector<16x128xf32>
    %300 = vector.broadcast %298 : vector<1x128xf32> to vector<16x128xf32>
    %301 = arith.addf %299, %300 : vector<16x128xf32>
    %c1_83 = arith.constant 1 : index
    %c0_84 = arith.constant 0 : index
    %c0_85 = arith.constant 0 : index
    %302 = vector.load %arg8[%c1_83, %c0_84, %c0_85] : memref<2x2x32xf32, #tpu.memory_space<vmem>>, vector<1x2x32xf32>
    %303 = vector.shape_cast %302 : vector<1x2x32xf32> to vector<2x32xf32>
    %c1_86 = arith.constant 1 : index
    %c0_87 = arith.constant 0 : index
    %c0_88 = arith.constant 0 : index
    %304 = vector.load %arg9[%c1_86, %c0_87, %c0_88] : memref<2x2x32xf32, #tpu.memory_space<vmem>>, vector<1x2x32xf32>
    %305 = vector.shape_cast %304 : vector<1x2x32xf32> to vector<2x32xf32>
    %306 = vector.extract_strided_slice %301 {offsets = [0, 0], sizes = [2, 128], strides = [1, 1]} : vector<16x128xf32> to vector<2x128xf32>
    %cst_89 = arith.constant dense<0.000000e+00> : vector<2x128xf32>
    %307 = tpu.matmul %303, %296, %cst_89 {dimension_numbers = #tpu.dot_dimension_numbers<[1], [0], [0], [1], [0, 0, 1, 1], [], []>} : vector<2x32xf32>, vector<32x128xf32>, vector<2x128xf32> -> vector<2x128xf32>
    %308 = arith.addf %306, %307 : vector<2x128xf32>
    %309 = arith.negf %308 : vector<2x128xf32>
    %310 = math.exp %309 : vector<2x128xf32>
    %cst_90 = arith.constant 1.000000e+00 : f32
    %311 = vector.broadcast %cst_90 : f32 to vector<2x128xf32>
    %312 = arith.addf %311, %310 : vector<2x128xf32>
    %313 = arith.divf %311, %312 : vector<2x128xf32>
    %314 = math.tanh %308 : vector<2x128xf32>
    %315 = vector.extract_strided_slice %313 {offsets = [0, 0], sizes = [2, 32], strides = [1, 1]} : vector<2x128xf32> to vector<2x32xf32>
    %316 = vector.extract_strided_slice %313 {offsets = [0, 32], sizes = [2, 32], strides = [1, 1]} : vector<2x128xf32> to vector<2x32xf32>
    %317 = vector.extract_strided_slice %314 {offsets = [0, 64], sizes = [2, 32], strides = [1, 1]} : vector<2x128xf32> to vector<2x32xf32>
    %318 = vector.extract_strided_slice %313 {offsets = [0, 96], sizes = [2, 32], strides = [1, 1]} : vector<2x128xf32> to vector<2x32xf32>
    %319 = arith.mulf %316, %305 : vector<2x32xf32>
    %320 = arith.mulf %315, %317 : vector<2x32xf32>
    %321 = arith.addf %319, %320 : vector<2x32xf32>
    %322 = math.tanh %321 : vector<2x32xf32>
    %323 = arith.mulf %318, %322 : vector<2x32xf32>
    %324 = vector.extract_strided_slice %32 {offsets = [0, 0], sizes = [2, 1], strides = [1, 1]} : vector<16x1xi1> to vector<2x1xi1>
    %325 = vector.shape_cast %324 : vector<2x1xi1> to vector<2x1xi1>
    %326 = vector.broadcast %325 : vector<2x1xi1> to vector<2x32xi1>
    %327 = arith.select %326, %323, %303 : vector<2x32xi1>, vector<2x32xf32>
    %328 = vector.shape_cast %324 : vector<2x1xi1> to vector<2x1xi1>
    %329 = vector.broadcast %328 : vector<2x1xi1> to vector<2x32xi1>
    %330 = arith.select %329, %321, %305 : vector<2x32xi1>, vector<2x32xf32>
    %cst_91 = arith.constant 0.000000e+00 : f32
    %331 = vector.shape_cast %324 : vector<2x1xi1> to vector<2x1xi1>
    %332 = vector.broadcast %331 : vector<2x1xi1> to vector<2x32xi1>
    %333 = vector.broadcast %cst_91 : f32 to vector<2x32xf32>
    %334 = arith.select %332, %323, %333 : vector<2x32xi1>, vector<2x32xf32>
    %c0_92 = arith.constant 0 : index
    %c0_93 = arith.constant 0 : index
    %335 = vector.load %arg16[%c0_92, %c0_93] : memref<16x32xf32, #tpu.memory_space<vmem>>, vector<2x32xf32>
    tpu.vector_store %arg16[%c0_92, %c0_93], %334 {strides = array<i32>} : memref<16x32xf32, #tpu.memory_space<vmem>>, vector<2x32xf32>,
    %336 = vector.extract_strided_slice %301 {offsets = [2, 0], sizes = [2, 128], strides = [1, 1]} : vector<16x128xf32> to vector<2x128xf32>
    %cst_94 = arith.constant dense<0.000000e+00> : vector<2x128xf32>
    %337 = tpu.matmul %327, %296, %cst_94 {dimension_numbers = #tpu.dot_dimension_numbers<[1], [0], [0], [1], [0, 0, 1, 1], [], []>} : vector<2x32xf32>, vector<32x128xf32>, vector<2x128xf32> -> vector<2x128xf32>
    %338 = arith.addf %336, %337 : vector<2x128xf32>
    %339 = arith.negf %338 : vector<2x128xf32>
    %340 = math.exp %339 : vector<2x128xf32>
    %cst_95 = arith.constant 1.000000e+00 : f32
    %341 = vector.broadcast %cst_95 : f32 to vector<2x128xf32>
    %342 = arith.addf %341, %340 : vector<2x128xf32>
    %343 = arith.divf %341, %342 : vector<2x128xf32>
    %344 = math.tanh %338 : vector<2x128xf32>
    %345 = vector.extract_strided_slice %343 {offsets = [0, 0], sizes = [2, 32], strides = [1, 1]} : vector<2x128xf32> to vector<2x32xf32>
    %346 = vector.extract_strided_slice %343 {offsets = [0, 32], sizes = [2, 32], strides = [1, 1]} : vector<2x128xf32> to vector<2x32xf32>
    %347 = vector.extract_strided_slice %344 {offsets = [0, 64], sizes = [2, 32], strides = [1, 1]} : vector<2x128xf32> to vector<2x32xf32>
    %348 = vector.extract_strided_slice %343 {offsets = [0, 96], sizes = [2, 32], strides = [1, 1]} : vector<2x128xf32> to vector<2x32xf32>
    %349 = arith.mulf %346, %330 : vector<2x32xf32>
    %350 = arith.mulf %345, %347 : vector<2x32xf32>
    %351 = arith.addf %349, %350 : vector<2x32xf32>
    %352 = math.tanh %351 : vector<2x32xf32>
    %353 = arith.mulf %348, %352 : vector<2x32xf32>
    %354 = vector.extract_strided_slice %32 {offsets = [2, 0], sizes = [2, 1], strides = [1, 1]} : vector<16x1xi1> to vector<2x1xi1>
    %355 = vector.shape_cast %354 : vector<2x1xi1> to vector<2x1xi1>
    %356 = vector.broadcast %355 : vector<2x1xi1> to vector<2x32xi1>
    %357 = arith.select %356, %353, %327 : vector<2x32xi1>, vector<2x32xf32>
    %358 = vector.shape_cast %354 : vector<2x1xi1> to vector<2x1xi1>
    %359 = vector.broadcast %358 : vector<2x1xi1> to vector<2x32xi1>
    %360 = arith.select %359, %351, %330 : vector<2x32xi1>, vector<2x32xf32>
    %cst_96 = arith.constant 0.000000e+00 : f32
    %361 = vector.shape_cast %354 : vector<2x1xi1> to vector<2x1xi1>
    %362 = vector.broadcast %361 : vector<2x1xi1> to vector<2x32xi1>
    %363 = vector.broadcast %cst_96 : f32 to vector<2x32xf32>
    %364 = arith.select %362, %353, %363 : vector<2x32xi1>, vector<2x32xf32>
    %c2_97 = arith.constant 2 : index
    %c0_98 = arith.constant 0 : index
    %365 = vector.load %arg16[%c2_97, %c0_98] : memref<16x32xf32, #tpu.memory_space<vmem>>, vector<2x32xf32>
    tpu.vector_store %arg16[%c2_97, %c0_98], %364 {strides = array<i32>} : memref<16x32xf32, #tpu.memory_space<vmem>>, vector<2x32xf32>,
    %366 = vector.extract_strided_slice %301 {offsets = [4, 0], sizes = [2, 128], strides = [1, 1]} : vector<16x128xf32> to vector<2x128xf32>
    %cst_99 = arith.constant dense<0.000000e+00> : vector<2x128xf32>
    %367 = tpu.matmul %357, %296, %cst_99 {dimension_numbers = #tpu.dot_dimension_numbers<[1], [0], [0], [1], [0, 0, 1, 1], [], []>} : vector<2x32xf32>, vector<32x128xf32>, vector<2x128xf32> -> vector<2x128xf32>
    %368 = arith.addf %366, %367 : vector<2x128xf32>
    %369 = arith.negf %368 : vector<2x128xf32>
    %370 = math.exp %369 : vector<2x128xf32>
    %cst_100 = arith.constant 1.000000e+00 : f32
    %371 = vector.broadcast %cst_100 : f32 to vector<2x128xf32>
    %372 = arith.addf %371, %370 : vector<2x128xf32>
    %373 = arith.divf %371, %372 : vector<2x128xf32>
    %374 = math.tanh %368 : vector<2x128xf32>
    %375 = vector.extract_strided_slice %373 {offsets = [0, 0], sizes = [2, 32], strides = [1, 1]} : vector<2x128xf32> to vector<2x32xf32>
    %376 = vector.extract_strided_slice %373 {offsets = [0, 32], sizes = [2, 32], strides = [1, 1]} : vector<2x128xf32> to vector<2x32xf32>
    %377 = vector.extract_strided_slice %374 {offsets = [0, 64], sizes = [2, 32], strides = [1, 1]} : vector<2x128xf32> to vector<2x32xf32>
    %378 = vector.extract_strided_slice %373 {offsets = [0, 96], sizes = [2, 32], strides = [1, 1]} : vector<2x128xf32> to vector<2x32xf32>
    %379 = arith.mulf %376, %360 : vector<2x32xf32>
    %380 = arith.mulf %375, %377 : vector<2x32xf32>
    %381 = arith.addf %379, %380 : vector<2x32xf32>
    %382 = math.tanh %381 : vector<2x32xf32>
    %383 = arith.mulf %378, %382 : vector<2x32xf32>
    %384 = vector.extract_strided_slice %32 {offsets = [4, 0], sizes = [2, 1], strides = [1, 1]} : vector<16x1xi1> to vector<2x1xi1>
    %385 = vector.shape_cast %384 : vector<2x1xi1> to vector<2x1xi1>
    %386 = vector.broadcast %385 : vector<2x1xi1> to vector<2x32xi1>
    %387 = arith.select %386, %383, %357 : vector<2x32xi1>, vector<2x32xf32>
    %388 = vector.shape_cast %384 : vector<2x1xi1> to vector<2x1xi1>
    %389 = vector.broadcast %388 : vector<2x1xi1> to vector<2x32xi1>
    %390 = arith.select %389, %381, %360 : vector<2x32xi1>, vector<2x32xf32>
    %cst_101 = arith.constant 0.000000e+00 : f32
    %391 = vector.shape_cast %384 : vector<2x1xi1> to vector<2x1xi1>
    %392 = vector.broadcast %391 : vector<2x1xi1> to vector<2x32xi1>
    %393 = vector.broadcast %cst_101 : f32 to vector<2x32xf32>
    %394 = arith.select %392, %383, %393 : vector<2x32xi1>, vector<2x32xf32>
    %c4_102 = arith.constant 4 : index
    %c0_103 = arith.constant 0 : index
    %395 = vector.load %arg16[%c4_102, %c0_103] : memref<16x32xf32, #tpu.memory_space<vmem>>, vector<2x32xf32>
    tpu.vector_store %arg16[%c4_102, %c0_103], %394 {strides = array<i32>} : memref<16x32xf32, #tpu.memory_space<vmem>>, vector<2x32xf32>,
    %396 = vector.extract_strided_slice %301 {offsets = [6, 0], sizes = [2, 128], strides = [1, 1]} : vector<16x128xf32> to vector<2x128xf32>
    %cst_104 = arith.constant dense<0.000000e+00> : vector<2x128xf32>
    %397 = tpu.matmul %387, %296, %cst_104 {dimension_numbers = #tpu.dot_dimension_numbers<[1], [0], [0], [1], [0, 0, 1, 1], [], []>} : vector<2x32xf32>, vector<32x128xf32>, vector<2x128xf32> -> vector<2x128xf32>
    %398 = arith.addf %396, %397 : vector<2x128xf32>
    %399 = arith.negf %398 : vector<2x128xf32>
    %400 = math.exp %399 : vector<2x128xf32>
    %cst_105 = arith.constant 1.000000e+00 : f32
    %401 = vector.broadcast %cst_105 : f32 to vector<2x128xf32>
    %402 = arith.addf %401, %400 : vector<2x128xf32>
    %403 = arith.divf %401, %402 : vector<2x128xf32>
    %404 = math.tanh %398 : vector<2x128xf32>
    %405 = vector.extract_strided_slice %403 {offsets = [0, 0], sizes = [2, 32], strides = [1, 1]} : vector<2x128xf32> to vector<2x32xf32>
    %406 = vector.extract_strided_slice %403 {offsets = [0, 32], sizes = [2, 32], strides = [1, 1]} : vector<2x128xf32> to vector<2x32xf32>
    %407 = vector.extract_strided_slice %404 {offsets = [0, 64], sizes = [2, 32], strides = [1, 1]} : vector<2x128xf32> to vector<2x32xf32>
    %408 = vector.extract_strided_slice %403 {offsets = [0, 96], sizes = [2, 32], strides = [1, 1]} : vector<2x128xf32> to vector<2x32xf32>
    %409 = arith.mulf %406, %390 : vector<2x32xf32>
    %410 = arith.mulf %405, %407 : vector<2x32xf32>
    %411 = arith.addf %409, %410 : vector<2x32xf32>
    %412 = math.tanh %411 : vector<2x32xf32>
    %413 = arith.mulf %408, %412 : vector<2x32xf32>
    %414 = vector.extract_strided_slice %32 {offsets = [6, 0], sizes = [2, 1], strides = [1, 1]} : vector<16x1xi1> to vector<2x1xi1>
    %415 = vector.shape_cast %414 : vector<2x1xi1> to vector<2x1xi1>
    %416 = vector.broadcast %415 : vector<2x1xi1> to vector<2x32xi1>
    %417 = arith.select %416, %413, %387 : vector<2x32xi1>, vector<2x32xf32>
    %418 = vector.shape_cast %414 : vector<2x1xi1> to vector<2x1xi1>
    %419 = vector.broadcast %418 : vector<2x1xi1> to vector<2x32xi1>
    %420 = arith.select %419, %411, %390 : vector<2x32xi1>, vector<2x32xf32>
    %cst_106 = arith.constant 0.000000e+00 : f32
    %421 = vector.shape_cast %414 : vector<2x1xi1> to vector<2x1xi1>
    %422 = vector.broadcast %421 : vector<2x1xi1> to vector<2x32xi1>
    %423 = vector.broadcast %cst_106 : f32 to vector<2x32xf32>
    %424 = arith.select %422, %413, %423 : vector<2x32xi1>, vector<2x32xf32>
    %c6_107 = arith.constant 6 : index
    %c0_108 = arith.constant 0 : index
    %425 = vector.load %arg16[%c6_107, %c0_108] : memref<16x32xf32, #tpu.memory_space<vmem>>, vector<2x32xf32>
    tpu.vector_store %arg16[%c6_107, %c0_108], %424 {strides = array<i32>} : memref<16x32xf32, #tpu.memory_space<vmem>>, vector<2x32xf32>,
    %426 = vector.extract_strided_slice %301 {offsets = [8, 0], sizes = [2, 128], strides = [1, 1]} : vector<16x128xf32> to vector<2x128xf32>
    %cst_109 = arith.constant dense<0.000000e+00> : vector<2x128xf32>
    %427 = tpu.matmul %417, %296, %cst_109 {dimension_numbers = #tpu.dot_dimension_numbers<[1], [0], [0], [1], [0, 0, 1, 1], [], []>} : vector<2x32xf32>, vector<32x128xf32>, vector<2x128xf32> -> vector<2x128xf32>
    %428 = arith.addf %426, %427 : vector<2x128xf32>
    %429 = arith.negf %428 : vector<2x128xf32>
    %430 = math.exp %429 : vector<2x128xf32>
    %cst_110 = arith.constant 1.000000e+00 : f32
    %431 = vector.broadcast %cst_110 : f32 to vector<2x128xf32>
    %432 = arith.addf %431, %430 : vector<2x128xf32>
    %433 = arith.divf %431, %432 : vector<2x128xf32>
    %434 = math.tanh %428 : vector<2x128xf32>
    %435 = vector.extract_strided_slice %433 {offsets = [0, 0], sizes = [2, 32], strides = [1, 1]} : vector<2x128xf32> to vector<2x32xf32>
    %436 = vector.extract_strided_slice %433 {offsets = [0, 32], sizes = [2, 32], strides = [1, 1]} : vector<2x128xf32> to vector<2x32xf32>
    %437 = vector.extract_strided_slice %434 {offsets = [0, 64], sizes = [2, 32], strides = [1, 1]} : vector<2x128xf32> to vector<2x32xf32>
    %438 = vector.extract_strided_slice %433 {offsets = [0, 96], sizes = [2, 32], strides = [1, 1]} : vector<2x128xf32> to vector<2x32xf32>
    %439 = arith.mulf %436, %420 : vector<2x32xf32>
    %440 = arith.mulf %435, %437 : vector<2x32xf32>
    %441 = arith.addf %439, %440 : vector<2x32xf32>
    %442 = math.tanh %441 : vector<2x32xf32>
    %443 = arith.mulf %438, %442 : vector<2x32xf32>
    %444 = vector.extract_strided_slice %32 {offsets = [8, 0], sizes = [2, 1], strides = [1, 1]} : vector<16x1xi1> to vector<2x1xi1>
    %445 = vector.shape_cast %444 : vector<2x1xi1> to vector<2x1xi1>
    %446 = vector.broadcast %445 : vector<2x1xi1> to vector<2x32xi1>
    %447 = arith.select %446, %443, %417 : vector<2x32xi1>, vector<2x32xf32>
    %448 = vector.shape_cast %444 : vector<2x1xi1> to vector<2x1xi1>
    %449 = vector.broadcast %448 : vector<2x1xi1> to vector<2x32xi1>
    %450 = arith.select %449, %441, %420 : vector<2x32xi1>, vector<2x32xf32>
    %cst_111 = arith.constant 0.000000e+00 : f32
    %451 = vector.shape_cast %444 : vector<2x1xi1> to vector<2x1xi1>
    %452 = vector.broadcast %451 : vector<2x1xi1> to vector<2x32xi1>
    %453 = vector.broadcast %cst_111 : f32 to vector<2x32xf32>
    %454 = arith.select %452, %443, %453 : vector<2x32xi1>, vector<2x32xf32>
    %c8_112 = arith.constant 8 : index
    %c0_113 = arith.constant 0 : index
    %455 = vector.load %arg16[%c8_112, %c0_113] : memref<16x32xf32, #tpu.memory_space<vmem>>, vector<2x32xf32>
    tpu.vector_store %arg16[%c8_112, %c0_113], %454 {strides = array<i32>} : memref<16x32xf32, #tpu.memory_space<vmem>>, vector<2x32xf32>,
    %456 = vector.extract_strided_slice %301 {offsets = [10, 0], sizes = [2, 128], strides = [1, 1]} : vector<16x128xf32> to vector<2x128xf32>
    %cst_114 = arith.constant dense<0.000000e+00> : vector<2x128xf32>
    %457 = tpu.matmul %447, %296, %cst_114 {dimension_numbers = #tpu.dot_dimension_numbers<[1], [0], [0], [1], [0, 0, 1, 1], [], []>} : vector<2x32xf32>, vector<32x128xf32>, vector<2x128xf32> -> vector<2x128xf32>
    %458 = arith.addf %456, %457 : vector<2x128xf32>
    %459 = arith.negf %458 : vector<2x128xf32>
    %460 = math.exp %459 : vector<2x128xf32>
    %cst_115 = arith.constant 1.000000e+00 : f32
    %461 = vector.broadcast %cst_115 : f32 to vector<2x128xf32>
    %462 = arith.addf %461, %460 : vector<2x128xf32>
    %463 = arith.divf %461, %462 : vector<2x128xf32>
    %464 = math.tanh %458 : vector<2x128xf32>
    %465 = vector.extract_strided_slice %463 {offsets = [0, 0], sizes = [2, 32], strides = [1, 1]} : vector<2x128xf32> to vector<2x32xf32>
    %466 = vector.extract_strided_slice %463 {offsets = [0, 32], sizes = [2, 32], strides = [1, 1]} : vector<2x128xf32> to vector<2x32xf32>
    %467 = vector.extract_strided_slice %464 {offsets = [0, 64], sizes = [2, 32], strides = [1, 1]} : vector<2x128xf32> to vector<2x32xf32>
    %468 = vector.extract_strided_slice %463 {offsets = [0, 96], sizes = [2, 32], strides = [1, 1]} : vector<2x128xf32> to vector<2x32xf32>
    %469 = arith.mulf %466, %450 : vector<2x32xf32>
    %470 = arith.mulf %465, %467 : vector<2x32xf32>
    %471 = arith.addf %469, %470 : vector<2x32xf32>
    %472 = math.tanh %471 : vector<2x32xf32>
    %473 = arith.mulf %468, %472 : vector<2x32xf32>
    %474 = vector.extract_strided_slice %32 {offsets = [10, 0], sizes = [2, 1], strides = [1, 1]} : vector<16x1xi1> to vector<2x1xi1>
    %475 = vector.shape_cast %474 : vector<2x1xi1> to vector<2x1xi1>
    %476 = vector.broadcast %475 : vector<2x1xi1> to vector<2x32xi1>
    %477 = arith.select %476, %473, %447 : vector<2x32xi1>, vector<2x32xf32>
    %478 = vector.shape_cast %474 : vector<2x1xi1> to vector<2x1xi1>
    %479 = vector.broadcast %478 : vector<2x1xi1> to vector<2x32xi1>
    %480 = arith.select %479, %471, %450 : vector<2x32xi1>, vector<2x32xf32>
    %cst_116 = arith.constant 0.000000e+00 : f32
    %481 = vector.shape_cast %474 : vector<2x1xi1> to vector<2x1xi1>
    %482 = vector.broadcast %481 : vector<2x1xi1> to vector<2x32xi1>
    %483 = vector.broadcast %cst_116 : f32 to vector<2x32xf32>
    %484 = arith.select %482, %473, %483 : vector<2x32xi1>, vector<2x32xf32>
    %c10_117 = arith.constant 10 : index
    %c0_118 = arith.constant 0 : index
    %485 = vector.load %arg16[%c10_117, %c0_118] : memref<16x32xf32, #tpu.memory_space<vmem>>, vector<2x32xf32>
    tpu.vector_store %arg16[%c10_117, %c0_118], %484 {strides = array<i32>} : memref<16x32xf32, #tpu.memory_space<vmem>>, vector<2x32xf32>,
    %486 = vector.extract_strided_slice %301 {offsets = [12, 0], sizes = [2, 128], strides = [1, 1]} : vector<16x128xf32> to vector<2x128xf32>
    %cst_119 = arith.constant dense<0.000000e+00> : vector<2x128xf32>
    %487 = tpu.matmul %477, %296, %cst_119 {dimension_numbers = #tpu.dot_dimension_numbers<[1], [0], [0], [1], [0, 0, 1, 1], [], []>} : vector<2x32xf32>, vector<32x128xf32>, vector<2x128xf32> -> vector<2x128xf32>
    %488 = arith.addf %486, %487 : vector<2x128xf32>
    %489 = arith.negf %488 : vector<2x128xf32>
    %490 = math.exp %489 : vector<2x128xf32>
    %cst_120 = arith.constant 1.000000e+00 : f32
    %491 = vector.broadcast %cst_120 : f32 to vector<2x128xf32>
    %492 = arith.addf %491, %490 : vector<2x128xf32>
    %493 = arith.divf %491, %492 : vector<2x128xf32>
    %494 = math.tanh %488 : vector<2x128xf32>
    %495 = vector.extract_strided_slice %493 {offsets = [0, 0], sizes = [2, 32], strides = [1, 1]} : vector<2x128xf32> to vector<2x32xf32>
    %496 = vector.extract_strided_slice %493 {offsets = [0, 32], sizes = [2, 32], strides = [1, 1]} : vector<2x128xf32> to vector<2x32xf32>
    %497 = vector.extract_strided_slice %494 {offsets = [0, 64], sizes = [2, 32], strides = [1, 1]} : vector<2x128xf32> to vector<2x32xf32>
    %498 = vector.extract_strided_slice %493 {offsets = [0, 96], sizes = [2, 32], strides = [1, 1]} : vector<2x128xf32> to vector<2x32xf32>
    %499 = arith.mulf %496, %480 : vector<2x32xf32>
    %500 = arith.mulf %495, %497 : vector<2x32xf32>
    %501 = arith.addf %499, %500 : vector<2x32xf32>
    %502 = math.tanh %501 : vector<2x32xf32>
    %503 = arith.mulf %498, %502 : vector<2x32xf32>
    %504 = vector.extract_strided_slice %32 {offsets = [12, 0], sizes = [2, 1], strides = [1, 1]} : vector<16x1xi1> to vector<2x1xi1>
    %505 = vector.shape_cast %504 : vector<2x1xi1> to vector<2x1xi1>
    %506 = vector.broadcast %505 : vector<2x1xi1> to vector<2x32xi1>
    %507 = arith.select %506, %503, %477 : vector<2x32xi1>, vector<2x32xf32>
    %508 = vector.shape_cast %504 : vector<2x1xi1> to vector<2x1xi1>
    %509 = vector.broadcast %508 : vector<2x1xi1> to vector<2x32xi1>
    %510 = arith.select %509, %501, %480 : vector<2x32xi1>, vector<2x32xf32>
    %cst_121 = arith.constant 0.000000e+00 : f32
    %511 = vector.shape_cast %504 : vector<2x1xi1> to vector<2x1xi1>
    %512 = vector.broadcast %511 : vector<2x1xi1> to vector<2x32xi1>
    %513 = vector.broadcast %cst_121 : f32 to vector<2x32xf32>
    %514 = arith.select %512, %503, %513 : vector<2x32xi1>, vector<2x32xf32>
    %c12_122 = arith.constant 12 : index
    %c0_123 = arith.constant 0 : index
    %515 = vector.load %arg16[%c12_122, %c0_123] : memref<16x32xf32, #tpu.memory_space<vmem>>, vector<2x32xf32>
    tpu.vector_store %arg16[%c12_122, %c0_123], %514 {strides = array<i32>} : memref<16x32xf32, #tpu.memory_space<vmem>>, vector<2x32xf32>,
    %516 = vector.extract_strided_slice %301 {offsets = [14, 0], sizes = [2, 128], strides = [1, 1]} : vector<16x128xf32> to vector<2x128xf32>
    %cst_124 = arith.constant dense<0.000000e+00> : vector<2x128xf32>
    %517 = tpu.matmul %507, %296, %cst_124 {dimension_numbers = #tpu.dot_dimension_numbers<[1], [0], [0], [1], [0, 0, 1, 1], [], []>} : vector<2x32xf32>, vector<32x128xf32>, vector<2x128xf32> -> vector<2x128xf32>
    %518 = arith.addf %516, %517 : vector<2x128xf32>
    %519 = arith.negf %518 : vector<2x128xf32>
    %520 = math.exp %519 : vector<2x128xf32>
    %cst_125 = arith.constant 1.000000e+00 : f32
    %521 = vector.broadcast %cst_125 : f32 to vector<2x128xf32>
    %522 = arith.addf %521, %520 : vector<2x128xf32>
    %523 = arith.divf %521, %522 : vector<2x128xf32>
    %524 = math.tanh %518 : vector<2x128xf32>
    %525 = vector.extract_strided_slice %523 {offsets = [0, 0], sizes = [2, 32], strides = [1, 1]} : vector<2x128xf32> to vector<2x32xf32>
    %526 = vector.extract_strided_slice %523 {offsets = [0, 32], sizes = [2, 32], strides = [1, 1]} : vector<2x128xf32> to vector<2x32xf32>
    %527 = vector.extract_strided_slice %524 {offsets = [0, 64], sizes = [2, 32], strides = [1, 1]} : vector<2x128xf32> to vector<2x32xf32>
    %528 = vector.extract_strided_slice %523 {offsets = [0, 96], sizes = [2, 32], strides = [1, 1]} : vector<2x128xf32> to vector<2x32xf32>
    %529 = arith.mulf %526, %510 : vector<2x32xf32>
    %530 = arith.mulf %525, %527 : vector<2x32xf32>
    %531 = arith.addf %529, %530 : vector<2x32xf32>
    %532 = math.tanh %531 : vector<2x32xf32>
    %533 = arith.mulf %528, %532 : vector<2x32xf32>
    %534 = vector.extract_strided_slice %32 {offsets = [14, 0], sizes = [2, 1], strides = [1, 1]} : vector<16x1xi1> to vector<2x1xi1>
    %535 = vector.shape_cast %534 : vector<2x1xi1> to vector<2x1xi1>
    %536 = vector.broadcast %535 : vector<2x1xi1> to vector<2x32xi1>
    %537 = arith.select %536, %533, %507 : vector<2x32xi1>, vector<2x32xf32>
    %538 = vector.shape_cast %534 : vector<2x1xi1> to vector<2x1xi1>
    %539 = vector.broadcast %538 : vector<2x1xi1> to vector<2x32xi1>
    %540 = arith.select %539, %531, %510 : vector<2x32xi1>, vector<2x32xf32>
    %cst_126 = arith.constant 0.000000e+00 : f32
    %541 = vector.shape_cast %534 : vector<2x1xi1> to vector<2x1xi1>
    %542 = vector.broadcast %541 : vector<2x1xi1> to vector<2x32xi1>
    %543 = vector.broadcast %cst_126 : f32 to vector<2x32xf32>
    %544 = arith.select %542, %533, %543 : vector<2x32xi1>, vector<2x32xf32>
    %c14_127 = arith.constant 14 : index
    %c0_128 = arith.constant 0 : index
    %545 = vector.load %arg16[%c14_127, %c0_128] : memref<16x32xf32, #tpu.memory_space<vmem>>, vector<2x32xf32>
    tpu.vector_store %arg16[%c14_127, %c0_128], %544 {strides = array<i32>} : memref<16x32xf32, #tpu.memory_space<vmem>>, vector<2x32xf32>,
    %c1_129 = arith.constant 1 : index
    %c0_130 = arith.constant 0 : index
    %c0_131 = arith.constant 0 : index
    %546 = vector.load %arg14[%c1_129, %c0_130, %c0_131] : memref<2x2x32xf32, #tpu.memory_space<vmem>>, vector<1x2x32xf32>
    %547 = vector.shape_cast %546 : vector<1x2x32xf32> to vector<2x32xf32>
    %548 = vector.shape_cast %537 : vector<2x32xf32> to vector<1x2x32xf32>
    tpu.vector_store %arg14[%c1_129, %c0_130, %c0_131], %548 {strides = array<i32>} : memref<2x2x32xf32, #tpu.memory_space<vmem>>, vector<1x2x32xf32>,
    %c1_132 = arith.constant 1 : index
    %c0_133 = arith.constant 0 : index
    %c0_134 = arith.constant 0 : index
    %549 = vector.load %arg15[%c1_132, %c0_133, %c0_134] : memref<2x2x32xf32, #tpu.memory_space<vmem>>, vector<1x2x32xf32>
    %550 = vector.shape_cast %549 : vector<1x2x32xf32> to vector<2x32xf32>
    %551 = vector.shape_cast %540 : vector<2x32xf32> to vector<1x2x32xf32>
    tpu.vector_store %arg15[%c1_132, %c0_133, %c0_134], %551 {strides = array<i32>} : memref<2x2x32xf32, #tpu.memory_space<vmem>>, vector<1x2x32xf32>,
    %c0_135 = arith.constant 0 : index
    %c0_136 = arith.constant 0 : index
    %552 = vector.load %arg16[%c0_135, %c0_136] : memref<16x32xf32, #tpu.memory_space<vmem>>, vector<16x32xf32>
    %cst_137 = arith.constant dense<0.000000e+00> : vector<32xf32>
    %553 = vector.multi_reduction <add>, %552, %cst_137 [0] : vector<16x32xf32> to vector<32xf32>
    %554 = vector.shape_cast %553 : vector<32xf32> to vector<1x32xf32>
    %cst_138 = arith.constant 1.600000e+01 : f32
    %555 = vector.broadcast %cst_138 : f32 to vector<1x32xf32>
    %556 = arith.divf %554, %555 : vector<1x32xf32>
    %557 = vector.broadcast %556 : vector<1x32xf32> to vector<16x32xf32>
    %558 = arith.subf %552, %557 : vector<16x32xf32>
    %559 = arith.mulf %558, %558 : vector<16x32xf32>
    %cst_139 = arith.constant dense<0.000000e+00> : vector<32xf32>
    %560 = vector.multi_reduction <add>, %559, %cst_139 [0] : vector<16x32xf32> to vector<32xf32>
    %561 = vector.shape_cast %560 : vector<32xf32> to vector<1x32xf32>
    %cst_140 = arith.constant 1.600000e+01 : f32
    %562 = vector.broadcast %cst_140 : f32 to vector<1x32xf32>
    %563 = arith.divf %561, %562 : vector<1x32xf32>
    %564 = vector.broadcast %556 : vector<1x32xf32> to vector<16x32xf32>
    %565 = arith.subf %552, %564 : vector<16x32xf32>
    %cst_141 = arith.constant 9.99999974E-6 : f32
    %566 = vector.broadcast %cst_141 : f32 to vector<1x32xf32>
    %567 = arith.addf %563, %566 : vector<1x32xf32>
    %568 = math.rsqrt %567 : vector<1x32xf32>
    %569 = vector.broadcast %568 : vector<1x32xf32> to vector<16x32xf32>
    %570 = arith.mulf %565, %569 : vector<16x32xf32>
    %571 = vector.broadcast %0 : vector<1x32xf32> to vector<16x32xf32>
    %572 = arith.mulf %570, %571 : vector<16x32xf32>
    %573 = vector.broadcast %1 : vector<1x32xf32> to vector<16x32xf32>
    %574 = arith.addf %572, %573 : vector<16x32xf32>
    %c0_142 = arith.constant 0 : index
    %c0_143 = arith.constant 0 : index
    %575 = vector.load %arg11[%c0_142, %c0_143] : memref<32x16xf32, #tpu.memory_space<vmem>>, vector<32x16xf32>
    %cst_144 = arith.constant dense<0.000000e+00> : vector<16x16xf32>
    %576 = tpu.matmul %574, %575, %cst_144 {dimension_numbers = #tpu.dot_dimension_numbers<[1], [0], [0], [1], [0, 0, 1, 1], [], []>} : vector<16x32xf32>, vector<32x16xf32>, vector<16x16xf32> -> vector<16x16xf32>
    %c0_145 = arith.constant 0 : index
    %c0_146 = arith.constant 0 : index
    %577 = vector.load %arg12[%c0_145, %c0_146] : memref<1x16xf32, #tpu.memory_space<vmem>>, vector<1x16xf32>
    %578 = vector.broadcast %577 : vector<1x16xf32> to vector<16x16xf32>
    %579 = arith.addf %576, %578 : vector<16x16xf32>
    %c0_147 = arith.constant 0 : index
    %c0_148 = arith.constant 0 : index
    %580 = vector.load %arg13[%c0_147, %c0_148] : memref<16x16xf32, #tpu.memory_space<vmem>>, vector<16x16xf32>
    tpu.vector_store %arg13[%c0_147, %c0_148], %579 {strides = array<i32>} : memref<16x16xf32, #tpu.memory_space<vmem>>, vector<16x16xf32>,
    return
  }
}

</mosaic_0001>

<llo_original>
// kernel: rnn_forward.1
$region0: #{rnn_forward.1}
  #allocation0 [shape = 'u32[]', space=smem, size = 0x4, offset = 0x4, fixed_abs, tag = 'smem constant byte address 0x4 - core index']
  #allocation1 [shape = 'u32[72,128]{1,0:T(1,128)}', space=vmem, size = 0x9000, scoped, tag = 'internal scratch']
  #allocation2 [shape = 'f32[16,32]{1,0:T(8,128)}', space=vmem, size = 0x2000, scoped, tag = 'scratch operand']
  %s0 = inlined_call_operand.hbm [shape: f32[16,16], index: 0, kind: input, shape index: {}]
  %s1 = inlined_call_operand.hbm [shape: f32[16,32], index: 1, kind: input, shape index: {}]
  %s2 = inlined_call_operand.vmem [shape: f32[1,32], index: 2, kind: input, shape index: {}]
  %s3 = inlined_call_operand.vmem [shape: f32[1,32], index: 3, kind: input, shape index: {}]
  %s4 = inlined_call_operand.vmem [shape: f32[1,32], index: 4, kind: input, shape index: {}]
  %s5 = inlined_call_operand.vmem [shape: f32[2,32,128], index: 5, kind: input, shape index: {}]
  %s6 = inlined_call_operand.hbm [shape: f32[2,32,128], index: 6, kind: input, shape index: {}]
  %s7 = inlined_call_operand.vmem [shape: f32[2,1,128], index: 7, kind: input, shape index: {}]
  %s8 = inlined_call_operand.vmem [shape: f32[2,2,32], index: 8, kind: input, shape index: {}, may-alias: {8,9}]
  %s9 = inlined_call_operand.vmem [shape: f32[2,2,32], index: 9, kind: input, shape index: {}, may-alias: {8,9}]
  %s10 = inlined_call_operand.vmem [shape: f32[16,1], index: 10, kind: input, shape index: {}]
  %s11 = inlined_call_operand.vmem [shape: f32[32,16], index: 11, kind: input, shape index: {}]
  %s12 = inlined_call_operand.vmem [shape: f32[1,16], index: 12, kind: input, shape index: {}]
  %s13 = inlined_call_operand.vmem [shape: f32[16,16], index: 13, kind: output, shape index: {0}]
  %s14 = inlined_call_operand.hbm [shape: f32[2,2,32], index: 14, kind: output, shape index: {1}]
  %s15 = inlined_call_operand.hbm [shape: f32[2,2,32], index: 15, kind: output, shape index: {2}]
  %16 = xla_tuple %s13, %s14, %s15
  %s17 = sld [smem:[#allocation0]]
  $region90: #{rnn_forward.1} parent=0
    _
  %s19 = ssub.s32 1, %s17
  %s20 = scalar_select 0, %s19, %s17
  $region1: #{rnn_forward.1} parent=0
    #allocation3 [shape = 'u8[8192]{0}', space=vmem, size = 0x2000, scoped, tag = 'input window, operand 0, single buffered']
    #allocation4 [shape = 's32[1]{0}', space=sflag, size = 0x4, scoped, tag = 'scoped memory for rnn_forward.1']
    #allocation5 [shape = 's32[1]{0}', space=sflag, size = 0x4, scoped, tag = 'scoped memory for rnn_forward.1']
    #allocation6 [shape = 'u8[8192]{0}', space=vmem, size = 0x2000, scoped, tag = 'input window, operand 1, single buffered']
    #allocation7 [shape = 's32[1]{0}', space=sflag, size = 0x4, scoped, tag = 'scoped memory for rnn_forward.1']
    #allocation8 [shape = 'u8[32768]{0}', space=vmem, size = 0x8000, scoped, tag = 'input window, operand 6, single buffered']
    #allocation9 [shape = 'u8[2048]{0}', space=vmem, size = 0x800, scoped, tag = 'output window, operand 1, single buffered']
    #allocation10 [shape = 'u8[2048]{0}', space=vmem, size = 0x800, scoped, tag = 'output window, operand 2, single buffered']
    #allocation11 [shape = 's32[1]{0}', space=sflag, size = 0x4, scoped, tag = 'scoped memory for rnn_forward.1']
    %21 = vsyncpa [#allocation4], 0
    %22 = vsyncpa [#allocation7], 0
    %23 = vsyncpa [#allocation5], 0
    %24 = vsyncpa [#allocation11], 0
    // Predicated region
    $region2: #{rnn_forward.1} parent=1 // pred_check
      _
    $region3: #{rnn_forward.1} parent=1 // pred_check_branch
      %26 = sbr.rel (0) target = $region5
    $region4: #{rnn_forward.1} parent=1 // pred_region
      %28 = vsyncadd [#allocation4], 0
      %s29 = sshll.u32 %s0, 4
      %s30 = int_to_ptr.hbm [resolvable:$true] %s29
      %s31 = sshll.u32 [#allocation3], 4
      %s32 = int_to_ptr.vmem [resolvable:$true] %s31
      %37 = dma.hbm_to_vmem [thread:$0]  %s30, 256, %s32, [#allocation4], 128, 128, 8
    $region5: #{rnn_forward.1} parent=1 // pred_fallthru
      _
    // Predicated region
    $region6: #{rnn_forward.1} parent=1 // pred_check
      _
    $region7: #{rnn_forward.1} parent=1 // pred_check_branch
      %39 = sbr.rel (0) target = $region9
    $region8: #{rnn_forward.1} parent=1 // pred_region
      %41 = vsyncadd [#allocation7], 0
      %s42 = sshll.u32 %s1, 4
      %s43 = int_to_ptr.hbm [resolvable:$true] %s42
      %s44 = sshll.u32 [#allocation6], 4
      %s45 = int_to_ptr.vmem [resolvable:$true] %s44
      %50 = dma.hbm_to_vmem [thread:$0]  %s43, 256, %s45, [#allocation7], 128, 128, 8
    $region9: #{rnn_forward.1} parent=1 // pred_fallthru
      _
    // Predicated region
    $region10: #{rnn_forward.1} parent=1 // pred_check
      _
    $region11: #{rnn_forward.1} parent=1 // pred_check_branch
      %52 = sbr.rel (0) target = $region13
    $region12: #{rnn_forward.1} parent=1 // pred_region
      _
    $region13: #{rnn_forward.1} parent=1 // pred_fallthru
      _
    // Predicated region
    $region14: #{rnn_forward.1} parent=1 // pred_check
      _
    $region15: #{rnn_forward.1} parent=1 // pred_check_branch
      %54 = sbr.rel (0) target = $region17
    $region16: #{rnn_forward.1} parent=1 // pred_region
      _
    $region17: #{rnn_forward.1} parent=1 // pred_fallthru
      _
    // Predicated region
    $region18: #{rnn_forward.1} parent=1 // pred_check
      _
    $region19: #{rnn_forward.1} parent=1 // pred_check_branch
      %56 = sbr.rel (0) target = $region21
    $region20: #{rnn_forward.1} parent=1 // pred_region
      _
    $region21: #{rnn_forward.1} parent=1 // pred_fallthru
      _
    // Predicated region
    $region22: #{rnn_forward.1} parent=1 // pred_check
      _
    $region23: #{rnn_forward.1} parent=1 // pred_check_branch
      %58 = sbr.rel (0) target = $region25
    $region24: #{rnn_forward.1} parent=1 // pred_region
      _
    $region25: #{rnn_forward.1} parent=1 // pred_fallthru
      _
    // Predicated region
    $region26: #{rnn_forward.1} parent=1 // pred_check
      _
    $region27: #{rnn_forward.1} parent=1 // pred_check_branch
      %60 = sbr.rel (0) target = $region29
    $region28: #{rnn_forward.1} parent=1 // pred_region
      %62 = vsyncadd [#allocation7], 0
      %s63 = sshll.u32 %s6, 4
      %s64 = int_to_ptr.hbm [resolvable:$true] %s63
      %s65 = sshll.u32 [#allocation8], 4
      %s66 = int_to_ptr.vmem [resolvable:$true] %s65
      %71 = dma.hbm_to_vmem [thread:$0]  %s64, 1024, %s66, [#allocation7], 128, 128, 8
    $region29: #{rnn_forward.1} parent=1 // pred_fallthru
      _
    // Predicated region
    $region30: #{rnn_forward.1} parent=1 // pred_check
      _
    $region31: #{rnn_forward.1} parent=1 // pred_check_branch
      %73 = sbr.rel (0) target = $region33
    $region32: #{rnn_forward.1} parent=1 // pred_region
      _
    $region33: #{rnn_forward.1} parent=1 // pred_fallthru
      _
    // Predicated region
    $region34: #{rnn_forward.1} parent=1 // pred_check
      _
    $region35: #{rnn_forward.1} parent=1 // pred_check_branch
      %75 = sbr.rel (0) target = $region37
    $region36: #{rnn_forward.1} parent=1 // pred_region
      _
    $region37: #{rnn_forward.1} parent=1 // pred_fallthru
      _
    // Predicated region
    $region38: #{rnn_forward.1} parent=1 // pred_check
      _
    $region39: #{rnn_forward.1} parent=1 // pred_check_branch
      %77 = sbr.rel (0) target = $region41
    $region40: #{rnn_forward.1} parent=1 // pred_region
      _
    $region41: #{rnn_forward.1} parent=1 // pred_fallthru
      _
    // Predicated region
    $region42: #{rnn_forward.1} parent=1 // pred_check
      _
    $region43: #{rnn_forward.1} parent=1 // pred_check_branch
      %79 = sbr.rel (0) target = $region45
    $region44: #{rnn_forward.1} parent=1 // pred_region
      _
    $region45: #{rnn_forward.1} parent=1 // pred_fallthru
      _
    // Predicated region
    $region46: #{rnn_forward.1} parent=1 // pred_check
      _
    $region47: #{rnn_forward.1} parent=1 // pred_check_branch
      %81 = sbr.rel (0) target = $region49
    $region48: #{rnn_forward.1} parent=1 // pred_region
      _
    $region49: #{rnn_forward.1} parent=1 // pred_fallthru
      _
    // Predicated region
    $region50: #{rnn_forward.1} parent=1 // pred_check
      _
    $region51: #{rnn_forward.1} parent=1 // pred_check_branch
      %83 = sbr.rel (0) target = $region53
    $region52: #{rnn_forward.1} parent=1 // pred_region
      _
    $region53: #{rnn_forward.1} parent=1 // pred_fallthru
      _
    // Predicated region
    $region54: #{rnn_forward.1} parent=1 // pred_check
      _
    $region55: #{rnn_forward.1} parent=1 // pred_check_branch
      %85 = sbr.rel (0) target = $region57
    $region56: #{rnn_forward.1} parent=1 // pred_region
      %87 = dma.done [#allocation4], 256
    $region57: #{rnn_forward.1} parent=1 // pred_fallthru
      _
    // Predicated region
    $region58: #{rnn_forward.1} parent=1 // pred_check
      _
    $region59: #{rnn_forward.1} parent=1 // pred_check_branch
      %89 = sbr.rel (0) target = $region61
    $region60: #{rnn_forward.1} parent=1 // pred_region
      %91 = dma.done [#allocation7], 256
    $region61: #{rnn_forward.1} parent=1 // pred_fallthru
      _
    // Predicated region
    $region62: #{rnn_forward.1} parent=1 // pred_check
      _
    $region63: #{rnn_forward.1} parent=1 // pred_check_branch
      %93 = sbr.rel (0) target = $region65
    $region64: #{rnn_forward.1} parent=1 // pred_region
      %95 = dma.done [#allocation7], 1024
    $region65: #{rnn_forward.1} parent=1 // pred_fallthru
      _
    %v96 = vld [vmem:[%s3] sm:$0x1]
    %v97 = vld [vmem:[%s4] sm:$0x1]
    %v98 = vld [vmem:[#allocation3] sm:$0xff]
    %v99 = vld [vmem:[#allocation3 + $0x8] sm:$0xff]
    %v100 = vld [vmem:[#allocation6] sm:$0xff]
    %v101 = vld [vmem:[#allocation6 + $0x8] sm:$0xff]
    %v102 = vld [vmem:[%s2] sm:$0x1]
    %v104 = vperm.slane %v102, 0
    %vm106 = vcmask 130048
    %v108 = vsel %vm106, %v98, 0
    %v111 = vsel %vm106, %v99, 0
    %113 = vmatpush.msra.mxu0 0.0
    %114 = vmatpush.msra.mxu0 0.0
    %115 = vmatpush.msra.mxu0 0.0
    %116 = vmatpush.msra.mxu0 0.0
    %117 = vmatpush.msra.mxu0 0.0
    %118 = vmatpush.msra.mxu0 0.0
    %119 = vmatpush.msra.mxu0 0.0
    %120 = vmatpush.msra.mxu0 0.0
    %121 = vmatpush.msra.mxu0 0.0
    %122 = vmatpush.msra.mxu0 0.0
    %123 = vmatpush.msra.mxu0 0.0
    %124 = vmatpush.msra.mxu0 0.0
    %125 = vmatpush.msra.mxu0 0.0
    %126 = vmatpush.msra.mxu0 0.0
    %127 = vmatpush.msra.mxu0 %v101
    %128 = vmatpush.msra.mxu0 %v100
    %129 = vmatmul.f32.gmra.mxu0 %v108
    %v130 = vpop.f32.mrf.mxu0
    %v131 = vadd.f32 %v104, %v130
    %132 = vmatmul.f32.gmra.mxu0 %v111
    %v133 = vpop.f32.mrf.mxu0
    %v134 = vadd.f32 %v104, %v133
    %135 = vdwg.mxu0
    %vm136 = vcmask 261120
    %v137 = vsel %vm136, %v131, 0.0
    %v138 = vsel %vm136, %v134, 0.0
    %v139 = vadd.f32 %v137, %v138
    %v140 = vrot.slane %v139, 4
    %v141 = vadd.f32 %v139, %v140
    %v142 = vrot.slane %v141, 2
    %v143 = vadd.f32 %v141, %v142
    %v144 = vrot.slane %v143, 1
    %v145 = vadd.f32 %v143, %v144
    %v146 = vrcp.pop 16.0
    %v147 = vmul.f32 16.0, %v146
    %v148 = vsub.f32 1.0, %v147
    %v149 = vmul.f32 %v146, %v148
    %v150 = vadd.f32 %v146, %v149
    %vm151 = vweird.f32 %v146
    %v152 = vsel %vm151, %v146, %v150
    %v153 = vmul.f32 %v145, %v152
    %v154 = vsub.f32 %v131, %v153
    %v155 = vsub.f32 %v134, %v153
    %v156 = vmul.f32 %v154, %v154
    %v157 = vmul.f32 %v155, %v155
    %v158 = vsel %vm136, %v156, 0.0
    %v159 = vsel %vm136, %v157, 0.0
    %v160 = vadd.f32 %v158, %v159
    %v161 = vrot.slane %v160, 4
    %v162 = vadd.f32 %v160, %v161
    %v163 = vrot.slane %v162, 2
    %v164 = vadd.f32 %v162, %v163
    %v165 = vrot.slane %v164, 1
    %v166 = vadd.f32 %v164, %v165
    %v167 = vmul.f32 %v166, %v152
    %v168 = vadd.f32 %v167, 1e-05
    %v169 = vrsqrt.pop %v168
    %v170 = vmul.f32 %v169, %v168
    %v171 = vmul.f32 %v170, %v169
    %v172 = vmul.f32 0.5, %v171
    %v173 = vsub.f32 1.5, %v172
    %v174 = vmul.f32 %v169, %v173
    %vm175 = vweird.f32 %v168
    %vm176 = vweird.f32 %v169
    %vm177 = vmor %vm175, %vm176
    %v178 = vsel %vm177, %v169, %v174
    %v179 = vmul.f32 %v154, %v178
    %v180 = vmul.f32 %v155, %v178
    %v182 = vperm.slane %v96, 0
    %v184 = vmul.f32 %v179, %v182
    %v185 = vmul.f32 %v180, %v182
    %v187 = vperm.slane %v97, 0
    %v189 = vadd.f32 %v184, %v187
    %v190 = vadd.f32 %v185, %v187
    %v191 = vld [vmem:[%s10] sm:$0xff]
    %v192 = vld [vmem:[%s10 + $0x8] sm:$0xff]
    %vm193 = vcmp.gt.f32.partialorder %v191, 0.0
    %vm194 = vcmp.gt.f32.partialorder %v192, 0.0
    %v195 = vld [vmem:[%s5] sm:$0xff]
    %v196 = vld [vmem:[%s5 + $0x8] sm:$0xff]
    %v197 = vld [vmem:[%s5 + $0x10] sm:$0xff]
    %v198 = vld [vmem:[%s5 + $0x18] sm:$0xff]
    %v199 = vld [vmem:[#allocation8] sm:$0xff]
    %v200 = vld [vmem:[#allocation8 + $0x8] sm:$0xff]
    %v201 = vld [vmem:[#allocation8 + $0x10] sm:$0xff]
    %v202 = vld [vmem:[#allocation8 + $0x18] sm:$0xff]
    %v203 = vld [vmem:[%s7] sm:$0x1]
    %v205 = vperm.slane %v203, 0
    %v208 = vsel %vm136, %v189, 0
    %v211 = vsel %vm136, %v190, 0
    %213 = vmatpush.msra.mxu0 0.0
    %214 = vmatpush.msra.mxu0 0.0
    %215 = vmatpush.msra.mxu0 0.0
    %216 = vmatpush.msra.mxu0 0.0
    %217 = vmatpush.msra.mxu0 0.0
    %218 = vmatpush.msra.mxu0 0.0
    %219 = vmatpush.msra.mxu0 0.0
    %220 = vmatpush.msra.mxu0 0.0
    %221 = vmatpush.msra.mxu0 0.0
    %222 = vmatpush.msra.mxu0 0.0
    %223 = vmatpush.msra.mxu0 0.0
    %224 = vmatpush.msra.mxu0 0.0
    %225 = vmatpush.msra.mxu0 %v198
    %226 = vmatpush.msra.mxu0 %v197
    %227 = vmatpush.msra.mxu0 %v196
    %228 = vmatpush.msra.mxu0 %v195
    %229 = vmatmul.f32.gmra.mxu0 %v208
    %v230 = vpop.f32.mrf.mxu0
    %v231 = vadd.f32 %v205, %v230
    %232 = vmatmul.f32.gmra.mxu0 %v211
    %v233 = vpop.f32.mrf.mxu0
    %v234 = vadd.f32 %v205, %v233
    %235 = vdwg.mxu0
    %v236 = vld [vmem:[%s8] sm:$0x3]
    %v237 = vld [vmem:[%s9] sm:$0x3]
    %v239 = vsel %vm136, %v236, 0
    %241 = vmatpush.msra.mxu0 0.0
    %242 = vmatpush.msra.mxu0 0.0
    %243 = vmatpush.msra.mxu0 0.0
    %244 = vmatpush.msra.mxu0 0.0
    %245 = vmatpush.msra.mxu0 0.0
    %246 = vmatpush.msra.mxu0 0.0
    %247 = vmatpush.msra.mxu0 0.0
    %248 = vmatpush.msra.mxu0 0.0
    %249 = vmatpush.msra.mxu0 0.0
    %250 = vmatpush.msra.mxu0 0.0
    %251 = vmatpush.msra.mxu0 0.0
    %252 = vmatpush.msra.mxu0 0.0
    %253 = vmatpush.msra.mxu0 %v202
    %254 = vmatpush.msra.mxu0 %v201
    %255 = vmatpush.msra.mxu0 %v200
    %256 = vmatpush.msra.mxu0 %v199
    %257 = vmatmul.f32.gmra.mxu0 %v239
    %v258 = vpop.f32.mrf.mxu0
    %v259 = vadd.f32 0.0, %v258
    %260 = vdwg.mxu0
    %v261 = vadd.f32 %v231, %v259
    %v262 = vxor.u32 %v261, 2147483648
    %v263 = vmul.f32 %v262, 1.442695
    %v264 = vpow.pop %v263
    %v265 = vadd.f32 %v264, 1.0
    %v266 = vrcp.pop %v265
    %v267 = vmul.f32 %v265, %v266
    %v268 = vsub.f32 1.0, %v267
    %v269 = vmul.f32 %v266, %v268
    %v270 = vadd.f32 %v266, %v269
    %vm271 = vweird.f32 %v265
    %vm272 = vweird.f32 %v266
    %vm273 = vmor %vm271, %vm272
    %v274 = vsel %vm273, %v266, %v270
    %v275 = vand.u32 2147483647, %v265
    %vm276 = vcmp.eq.f32.partialorder %v275, 8.507059e+37
    %v277 = vand.u32 %v265, 2147483648
    %v278 = vor.u32 1.1754944e-38, %v277
    %v279 = vsel %vm276, %v278, %v274
    %v280 = vmul.f32 1.0, %v279
    %v281 = vtanh.pop %v261
    %283 = vrot.lane.b32.xlu0 %v237, 32
    %v284 = vpop.permute.xlu0 %283
    %v286 = vmul.f32 %v280, %v284
    %288 = vrot.lane.b32.xlu0 %v281, 64
    %v289 = vpop.permute.xlu0 %288
    %v291 = vmul.f32 %v280, %v289
    %293 = vrot.lane.b32.xlu0 %v291, 32
    %v294 = vpop.permute.xlu0 %293
    %v296 = vadd.f32 %v286, %v294
    %v297 = vtanh.pop %v296
    %299 = vrot.lane.b32.xlu0 %v297, 64
    %v300 = vpop.permute.xlu0 %299
    %v302 = vmul.f32 %v280, %v300
    %v303 = vsel %vm193, 1, 0
    %304 = vset.pattern.permute.xlu0 0
    %305 = vperm.xlu0 %304, %v303
    %v306 = vpop.permute.xlu0 %305
    %vm307 = vcmp.eq.s32.totalorder %v306, 1
    %308 = vrot.lane.b32.xlu0 %v236, 96
    %v309 = vpop.permute.xlu0 %308
    %v311 = vsel %vm307, %v302, %v309
    %v312 = vsel %vm307, %v296, %v284
    %v313 = vsel %vm307, %v302, 0.0
    %315 = vrot.lane.b32.xlu0 %v313, 32
    %v316 = vpop.permute.xlu0 %315
    %vm318 = vcmask 254976
    %319 = vst.msk [vmem:[#allocation2] sm:$0x3] %vm318, %v316
    %321 = vrot.lane.b32.xlu0 %v311, 32
    %v322 = vpop.permute.xlu0 %321
    %v323 = vsel %vm136, %v322, 0
    %325 = vmatpush.msra.mxu0 0.0
    %326 = vmatpush.msra.mxu0 0.0
    %327 = vmatpush.msra.mxu0 0.0
    %328 = vmatpush.msra.mxu0 0.0
    %329 = vmatpush.msra.mxu0 0.0
    %330 = vmatpush.msra.mxu0 0.0
    %331 = vmatpush.msra.mxu0 0.0
    %332 = vmatpush.msra.mxu0 0.0
    %333 = vmatpush.msra.mxu0 0.0
    %334 = vmatpush.msra.mxu0 0.0
    %335 = vmatpush.msra.mxu0 0.0
    %336 = vmatpush.msra.mxu0 0.0
    %337 = vmatpush.msra.mxu0 %v202
    %338 = vmatpush.msra.mxu0 %v201
    %339 = vmatpush.msra.mxu0 %v200
    %340 = vmatpush.msra.mxu0 %v199
    %341 = vmatmul.f32.gmra.mxu0 %v323
    %v342 = vpop.f32.mrf.mxu0
    %v343 = vadd.f32 0.0, %v342
    %344 = vdwg.mxu0
    %v346 = vrot.slane %v343, 6
    %v348 = vadd.f32 %v231, %v346
    %v349 = vxor.u32 %v348, 2147483648
    %v350 = vmul.f32 %v349, 1.442695
    %v351 = vpow.pop %v350
    %v352 = vadd.f32 %v351, 1.0
    %v353 = vrcp.pop %v352
    %v354 = vmul.f32 %v352, %v353
    %v355 = vsub.f32 1.0, %v354
    %v356 = vmul.f32 %v353, %v355
    %v357 = vadd.f32 %v353, %v356
    %vm358 = vweird.f32 %v352
    %vm359 = vweird.f32 %v353
    %vm360 = vmor %vm358, %vm359
    %v361 = vsel %vm360, %v353, %v357
    %v362 = vand.u32 2147483647, %v352
    %vm363 = vcmp.eq.f32.partialorder %v362, 8.507059e+37
    %v364 = vand.u32 %v352, 2147483648
    %v365 = vor.u32 1.1754944e-38, %v364
    %v366 = vsel %vm363, %v365, %v361
    %v367 = vmul.f32 1.0, %v366
    %v368 = vtanh.pop %v348
    %v370 = vrot.slane %v312, 6
    %v372 = vmul.f32 %v367, %v370
    %374 = vrot.lane.b32.xlu0 %v368, 64
    %v375 = vpop.permute.xlu0 %374
    %v377 = vmul.f32 %v367, %v375
    %379 = vrot.lane.b32.xlu0 %v377, 32
    %v380 = vpop.permute.xlu0 %379
    %v382 = vadd.f32 %v372, %v380
    %v383 = vtanh.pop %v382
    %385 = vrot.lane.b32.xlu0 %v383, 64
    %v386 = vpop.permute.xlu0 %385
    %v388 = vmul.f32 %v367, %v386
    %v389 = vrot.slane %v311, 6
    %v391 = vsel %vm307, %v388, %v389
    %v392 = vsel %vm307, %v382, %v370
    %v393 = vsel %vm307, %v388, 0.0
    %395 = vrot.lane.b32.xlu0 %v393, 32
    %v396 = vpop.permute.xlu0 %395
    %vm398 = vcmask 257026
    %399 = vst.msk [vmem:[#allocation2] sm:$0xc] %vm398, %v396
    %v401 = vrot.slane %v391, 2
    %402 = vrot.lane.b32.xlu0 %v401, 32
    %v403 = vpop.permute.xlu0 %402
    %v404 = vsel %vm136, %v403, 0
    %406 = vmatpush.msra.mxu0 0.0
    %407 = vmatpush.msra.mxu0 0.0
    %408 = vmatpush.msra.mxu0 0.0
    %409 = vmatpush.msra.mxu0 0.0
    %410 = vmatpush.msra.mxu0 0.0
    %411 = vmatpush.msra.mxu0 0.0
    %412 = vmatpush.msra.mxu0 0.0
    %413 = vmatpush.msra.mxu0 0.0
    %414 = vmatpush.msra.mxu0 0.0
    %415 = vmatpush.msra.mxu0 0.0
    %416 = vmatpush.msra.mxu0 0.0
    %417 = vmatpush.msra.mxu0 0.0
    %418 = vmatpush.msra.mxu0 %v202
    %419 = vmatpush.msra.mxu0 %v201
    %420 = vmatpush.msra.mxu0 %v200
    %421 = vmatpush.msra.mxu0 %v199
    %422 = vmatmul.f32.gmra.mxu0 %v404
    %v423 = vpop.f32.mrf.mxu0
    %v424 = vadd.f32 0.0, %v423
    %425 = vdwg.mxu0
    %v427 = vrot.slane %v424, 4
    %v429 = vadd.f32 %v231, %v427
    %v430 = vxor.u32 %v429, 2147483648
    %v431 = vmul.f32 %v430, 1.442695
    %v432 = vpow.pop %v431
    %v433 = vadd.f32 %v432, 1.0
    %v434 = vrcp.pop %v433
    %v435 = vmul.f32 %v433, %v434
    %v436 = vsub.f32 1.0, %v435
    %v437 = vmul.f32 %v434, %v436
    %v438 = vadd.f32 %v434, %v437
    %vm439 = vweird.f32 %v433
    %vm440 = vweird.f32 %v434
    %vm441 = vmor %vm439, %vm440
    %v442 = vsel %vm441, %v434, %v438
    %v443 = vand.u32 2147483647, %v433
    %vm444 = vcmp.eq.f32.partialorder %v443, 8.507059e+37
    %v445 = vand.u32 %v433, 2147483648
    %v446 = vor.u32 1.1754944e-38, %v445
    %v447 = vsel %vm444, %v446, %v442
    %v448 = vmul.f32 1.0, %v447
    %v449 = vtanh.pop %v429
    %v451 = vrot.slane %v392, 6
    %v453 = vmul.f32 %v448, %v451
    %455 = vrot.lane.b32.xlu0 %v449, 64
    %v456 = vpop.permute.xlu0 %455
    %v458 = vmul.f32 %v448, %v456
    %460 = vrot.lane.b32.xlu0 %v458, 32
    %v461 = vpop.permute.xlu0 %460
    %v463 = vadd.f32 %v453, %v461
    %v464 = vtanh.pop %v463
    %466 = vrot.lane.b32.xlu0 %v464, 64
    %v467 = vpop.permute.xlu0 %466
    %v469 = vmul.f32 %v448, %v467
    %v470 = vrot.slane %v391, 6
    %v472 = vsel %vm307, %v469, %v470
    %v473 = vsel %vm307, %v463, %v451
    %v474 = vsel %vm307, %v469, 0.0
    %476 = vrot.lane.b32.xlu0 %v474, 32
    %v477 = vpop.permute.xlu0 %476
    %vm479 = vcmask 259076
    %480 = vst.msk [vmem:[#allocation2] sm:$0x30] %vm479, %v477
    %v482 = vrot.slane %v472, 4
    %483 = vrot.lane.b32.xlu0 %v482, 32
    %v484 = vpop.permute.xlu0 %483
    %v485 = vsel %vm136, %v484, 0
    %487 = vmatpush.msra.mxu0 0.0
    %488 = vmatpush.msra.mxu0 0.0
    %489 = vmatpush.msra.mxu0 0.0
    %490 = vmatpush.msra.mxu0 0.0
    %491 = vmatpush.msra.mxu0 0.0
    %492 = vmatpush.msra.mxu0 0.0
    %493 = vmatpush.msra.mxu0 0.0
    %494 = vmatpush.msra.mxu0 0.0
    %495 = vmatpush.msra.mxu0 0.0
    %496 = vmatpush.msra.mxu0 0.0
    %497 = vmatpush.msra.mxu0 0.0
    %498 = vmatpush.msra.mxu0 0.0
    %499 = vmatpush.msra.mxu0 %v202
    %500 = vmatpush.msra.mxu0 %v201
    %501 = vmatpush.msra.mxu0 %v200
    %502 = vmatpush.msra.mxu0 %v199
    %503 = vmatmul.f32.gmra.mxu0 %v485
    %v504 = vpop.f32.mrf.mxu0
    %v505 = vadd.f32 0.0, %v504
    %506 = vdwg.mxu0
    %v508 = vrot.slane %v505, 2
    %v510 = vadd.f32 %v231, %v508
    %v511 = vxor.u32 %v510, 2147483648
    %v512 = vmul.f32 %v511, 1.442695
    %v513 = vpow.pop %v512
    %v514 = vadd.f32 %v513, 1.0
    %v515 = vrcp.pop %v514
    %v516 = vmul.f32 %v514, %v515
    %v517 = vsub.f32 1.0, %v516
    %v518 = vmul.f32 %v515, %v517
    %v519 = vadd.f32 %v515, %v518
    %vm520 = vweird.f32 %v514
    %vm521 = vweird.f32 %v515
    %vm522 = vmor %vm520, %vm521
    %v523 = vsel %vm522, %v515, %v519
    %v524 = vand.u32 2147483647, %v514
    %vm525 = vcmp.eq.f32.partialorder %v524, 8.507059e+37
    %v526 = vand.u32 %v514, 2147483648
    %v527 = vor.u32 1.1754944e-38, %v526
    %v528 = vsel %vm525, %v527, %v523
    %v529 = vmul.f32 1.0, %v528
    %v530 = vtanh.pop %v510
    %v532 = vrot.slane %v473, 6
    %v534 = vmul.f32 %v529, %v532
    %536 = vrot.lane.b32.xlu0 %v530, 64
    %v537 = vpop.permute.xlu0 %536
    %v539 = vmul.f32 %v529, %v537
    %541 = vrot.lane.b32.xlu0 %v539, 32
    %v542 = vpop.permute.xlu0 %541
    %v544 = vadd.f32 %v534, %v542
    %v545 = vtanh.pop %v544
    %547 = vrot.lane.b32.xlu0 %v545, 64
    %v548 = vpop.permute.xlu0 %547
    %v550 = vmul.f32 %v529, %v548
    %v551 = vrot.slane %v472, 6
    %v553 = vsel %vm307, %v550, %v551
    %v554 = vsel %vm307, %v544, %v532
    %v555 = vsel %vm307, %v550, 0.0
    %557 = vrot.lane.b32.xlu0 %v555, 32
    %v558 = vpop.permute.xlu0 %557
    %vm560 = vcmask 261126
    %561 = vst.msk [vmem:[#allocation2] sm:$0xc0] %vm560, %v558
    %v563 = vrot.slane %v553, 6
    %564 = vrot.lane.b32.xlu0 %v563, 32
    %v565 = vpop.permute.xlu0 %564
    %v566 = vsel %vm136, %v565, 0
    %568 = vmatpush.msra.mxu0 0.0
    %569 = vmatpush.msra.mxu0 0.0
    %570 = vmatpush.msra.mxu0 0.0
    %571 = vmatpush.msra.mxu0 0.0
    %572 = vmatpush.msra.mxu0 0.0
    %573 = vmatpush.msra.mxu0 0.0
    %574 = vmatpush.msra.mxu0 0.0
    %575 = vmatpush.msra.mxu0 0.0
    %576 = vmatpush.msra.mxu0 0.0
    %577 = vmatpush.msra.mxu0 0.0
    %578 = vmatpush.msra.mxu0 0.0
    %579 = vmatpush.msra.mxu0 0.0
    %580 = vmatpush.msra.mxu0 %v202
    %581 = vmatpush.msra.mxu0 %v201
    %582 = vmatpush.msra.mxu0 %v200
    %583 = vmatpush.msra.mxu0 %v199
    %584 = vmatmul.f32.gmra.mxu0 %v566
    %v585 = vpop.f32.mrf.mxu0
    %v586 = vadd.f32 0.0, %v585
    %587 = vdwg.mxu0
    %v588 = vadd.f32 %v234, %v586
    %v589 = vxor.u32 %v588, 2147483648
    %v590 = vmul.f32 %v589, 1.442695
    %v591 = vpow.pop %v590
    %v592 = vadd.f32 %v591, 1.0
    %v593 = vrcp.pop %v592
    %v594 = vmul.f32 %v592, %v593
    %v595 = vsub.f32 1.0, %v594
    %v596 = vmul.f32 %v593, %v595
    %v597 = vadd.f32 %v593, %v596
    %vm598 = vweird.f32 %v592
    %vm599 = vweird.f32 %v593
    %vm600 = vmor %vm598, %vm599
    %v601 = vsel %vm600, %v593, %v597
    %v602 = vand.u32 2147483647, %v592
    %vm603 = vcmp.eq.f32.partialorder %v602, 8.507059e+37
    %v604 = vand.u32 %v592, 2147483648
    %v605 = vor.u32 1.1754944e-38, %v604
    %v606 = vsel %vm603, %v605, %v601
    %v607 = vmul.f32 1.0, %v606
    %v608 = vtanh.pop %v588
    %v610 = vrot.slane %v554, 6
    %v612 = vmul.f32 %v607, %v610
    %614 = vrot.lane.b32.xlu0 %v608, 64
    %v615 = vpop.permute.xlu0 %614
    %v617 = vmul.f32 %v607, %v615
    %619 = vrot.lane.b32.xlu0 %v617, 32
    %v620 = vpop.permute.xlu0 %619
    %v622 = vadd.f32 %v612, %v620
    %v623 = vtanh.pop %v622
    %625 = vrot.lane.b32.xlu0 %v623, 64
    %v626 = vpop.permute.xlu0 %625
    %v628 = vmul.f32 %v607, %v626
    %v629 = vsel %vm194, 1, 0
    %630 = vset.pattern.permute.xlu0 0
    %631 = vperm.xlu0 %630, %v629
    %v632 = vpop.permute.xlu0 %631
    %vm633 = vcmp.eq.s32.totalorder %v632, 1
    %v635 = vsel %vm633, %v628, %v563
    %v636 = vsel %vm633, %v622, %v610
    %v637 = vsel %vm633, %v628, 0.0
    %639 = vrot.lane.b32.xlu0 %v637, 32
    %v640 = vpop.permute.xlu0 %639
    %642 = vst.msk [vmem:[#allocation2 + $0x8] sm:$0x3] %vm318, %v640
    %644 = vrot.lane.b32.xlu0 %v635, 32
    %v645 = vpop.permute.xlu0 %644
    %v646 = vsel %vm136, %v645, 0
    %648 = vmatpush.msra.mxu0 0.0
    %649 = vmatpush.msra.mxu0 0.0
    %650 = vmatpush.msra.mxu0 0.0
    %651 = vmatpush.msra.mxu0 0.0
    %652 = vmatpush.msra.mxu0 0.0
    %653 = vmatpush.msra.mxu0 0.0
    %654 = vmatpush.msra.mxu0 0.0
    %655 = vmatpush.msra.mxu0 0.0
    %656 = vmatpush.msra.mxu0 0.0
    %657 = vmatpush.msra.mxu0 0.0
    %658 = vmatpush.msra.mxu0 0.0
    %659 = vmatpush.msra.mxu0 0.0
    %660 = vmatpush.msra.mxu0 %v202
    %661 = vmatpush.msra.mxu0 %v201
    %662 = vmatpush.msra.mxu0 %v200
    %663 = vmatpush.msra.mxu0 %v199
    %664 = vmatmul.f32.gmra.mxu0 %v646
    %v665 = vpop.f32.mrf.mxu0
    %v666 = vadd.f32 0.0, %v665
    %667 = vdwg.mxu0
    %v669 = vrot.slane %v666, 6
    %v671 = vadd.f32 %v234, %v669
    %v672 = vxor.u32 %v671, 2147483648
    %v673 = vmul.f32 %v672, 1.442695
    %v674 = vpow.pop %v673
    %v675 = vadd.f32 %v674, 1.0
    %v676 = vrcp.pop %v675
    %v677 = vmul.f32 %v675, %v676
    %v678 = vsub.f32 1.0, %v677
    %v679 = vmul.f32 %v676, %v678
    %v680 = vadd.f32 %v676, %v679
    %vm681 = vweird.f32 %v675
    %vm682 = vweird.f32 %v676
    %vm683 = vmor %vm681, %vm682
    %v684 = vsel %vm683, %v676, %v680
    %v685 = vand.u32 2147483647, %v675
    %vm686 = vcmp.eq.f32.partialorder %v685, 8.507059e+37
    %v687 = vand.u32 %v675, 2147483648
    %v688 = vor.u32 1.1754944e-38, %v687
    %v689 = vsel %vm686, %v688, %v684
    %v690 = vmul.f32 1.0, %v689
    %v691 = vtanh.pop %v671
    %v693 = vrot.slane %v636, 6
    %v695 = vmul.f32 %v690, %v693
    %697 = vrot.lane.b32.xlu0 %v691, 64
    %v698 = vpop.permute.xlu0 %697
    %v700 = vmul.f32 %v690, %v698
    %702 = vrot.lane.b32.xlu0 %v700, 32
    %v703 = vpop.permute.xlu0 %702
    %v705 = vadd.f32 %v695, %v703
    %v706 = vtanh.pop %v705
    %708 = vrot.lane.b32.xlu0 %v706, 64
    %v709 = vpop.permute.xlu0 %708
    %v711 = vmul.f32 %v690, %v709
    %v712 = vrot.slane %v635, 6
    %v714 = vsel %vm633, %v711, %v712
    %v715 = vsel %vm633, %v705, %v693
    %v716 = vsel %vm633, %v711, 0.0
    %718 = vrot.lane.b32.xlu0 %v716, 32
    %v719 = vpop.permute.xlu0 %718
    %721 = vst.msk [vmem:[#allocation2 + $0x8] sm:$0xc] %vm398, %v719
    %v723 = vrot.slane %v714, 2
    %724 = vrot.lane.b32.xlu0 %v723, 32
    %v725 = vpop.permute.xlu0 %724
    %v726 = vsel %vm136, %v725, 0
    %728 = vmatpush.msra.mxu0 0.0
    %729 = vmatpush.msra.mxu0 0.0
    %730 = vmatpush.msra.mxu0 0.0
    %731 = vmatpush.msra.mxu0 0.0
    %732 = vmatpush.msra.mxu0 0.0
    %733 = vmatpush.msra.mxu0 0.0
    %734 = vmatpush.msra.mxu0 0.0
    %735 = vmatpush.msra.mxu0 0.0
    %736 = vmatpush.msra.mxu0 0.0
    %737 = vmatpush.msra.mxu0 0.0
    %738 = vmatpush.msra.mxu0 0.0
    %739 = vmatpush.msra.mxu0 0.0
    %740 = vmatpush.msra.mxu0 %v202
    %741 = vmatpush.msra.mxu0 %v201
    %742 = vmatpush.msra.mxu0 %v200
    %743 = vmatpush.msra.mxu0 %v199
    %744 = vmatmul.f32.gmra.mxu0 %v726
    %v745 = vpop.f32.mrf.mxu0
    %v746 = vadd.f32 0.0, %v745
    %747 = vdwg.mxu0
    %v749 = vrot.slane %v746, 4
    %v751 = vadd.f32 %v234, %v749
    %v752 = vxor.u32 %v751, 2147483648
    %v753 = vmul.f32 %v752, 1.442695
    %v754 = vpow.pop %v753
    %v755 = vadd.f32 %v754, 1.0
    %v756 = vrcp.pop %v755
    %v757 = vmul.f32 %v755, %v756
    %v758 = vsub.f32 1.0, %v757
    %v759 = vmul.f32 %v756, %v758
    %v760 = vadd.f32 %v756, %v759
    %vm761 = vweird.f32 %v755
    %vm762 = vweird.f32 %v756
    %vm763 = vmor %vm761, %vm762
    %v764 = vsel %vm763, %v756, %v760
    %v765 = vand.u32 2147483647, %v755
    %vm766 = vcmp.eq.f32.partialorder %v765, 8.507059e+37
    %v767 = vand.u32 %v755, 2147483648
    %v768 = vor.u32 1.1754944e-38, %v767
    %v769 = vsel %vm766, %v768, %v764
    %v770 = vmul.f32 1.0, %v769
    %v771 = vtanh.pop %v751
    %v773 = vrot.slane %v715, 6
    %v775 = vmul.f32 %v770, %v773
    %777 = vrot.lane.b32.xlu0 %v771, 64
    %v778 = vpop.permute.xlu0 %777
    %v780 = vmul.f32 %v770, %v778
    %782 = vrot.lane.b32.xlu0 %v780, 32
    %v783 = vpop.permute.xlu0 %782
    %v785 = vadd.f32 %v775, %v783
    %v786 = vtanh.pop %v785
    %788 = vrot.lane.b32.xlu0 %v786, 64
    %v789 = vpop.permute.xlu0 %788
    %v791 = vmul.f32 %v770, %v789
    %v792 = vrot.slane %v714, 6
    %v794 = vsel %vm633, %v791, %v792
    %v795 = vsel %vm633, %v785, %v773
    %v796 = vsel %vm633, %v791, 0.0
    %798 = vrot.lane.b32.xlu0 %v796, 32
    %v799 = vpop.permute.xlu0 %798
    %801 = vst.msk [vmem:[#allocation2 + $0x8] sm:$0x30] %vm479, %v799
    %v803 = vrot.slane %v794, 4
    %804 = vrot.lane.b32.xlu0 %v803, 32
    %v805 = vpop.permute.xlu0 %804
    %v806 = vsel %vm136, %v805, 0
    %808 = vmatpush.msra.mxu0 0.0
    %809 = vmatpush.msra.mxu0 0.0
    %810 = vmatpush.msra.mxu0 0.0
    %811 = vmatpush.msra.mxu0 0.0
    %812 = vmatpush.msra.mxu0 0.0
    %813 = vmatpush.msra.mxu0 0.0
    %814 = vmatpush.msra.mxu0 0.0
    %815 = vmatpush.msra.mxu0 0.0
    %816 = vmatpush.msra.mxu0 0.0
    %817 = vmatpush.msra.mxu0 0.0
    %818 = vmatpush.msra.mxu0 0.0
    %819 = vmatpush.msra.mxu0 0.0
    %820 = vmatpush.msra.mxu0 %v202
    %821 = vmatpush.msra.mxu0 %v201
    %822 = vmatpush.msra.mxu0 %v200
    %823 = vmatpush.msra.mxu0 %v199
    %824 = vmatmul.f32.gmra.mxu0 %v806
    %v825 = vpop.f32.mrf.mxu0
    %v826 = vadd.f32 0.0, %v825
    %827 = vdwg.mxu0
    %v829 = vrot.slane %v826, 2
    %v831 = vadd.f32 %v234, %v829
    %v832 = vxor.u32 %v831, 2147483648
    %v833 = vmul.f32 %v832, 1.442695
    %v834 = vpow.pop %v833
    %v835 = vadd.f32 %v834, 1.0
    %v836 = vrcp.pop %v835
    %v837 = vmul.f32 %v835, %v836
    %v838 = vsub.f32 1.0, %v837
    %v839 = vmul.f32 %v836, %v838
    %v840 = vadd.f32 %v836, %v839
    %vm841 = vweird.f32 %v835
    %vm842 = vweird.f32 %v836
    %vm843 = vmor %vm841, %vm842
    %v844 = vsel %vm843, %v836, %v840
    %v845 = vand.u32 2147483647, %v835
    %vm846 = vcmp.eq.f32.partialorder %v845, 8.507059e+37
    %v847 = vand.u32 %v835, 2147483648
    %v848 = vor.u32 1.1754944e-38, %v847
    %v849 = vsel %vm846, %v848, %v844
    %v850 = vmul.f32 1.0, %v849
    %v851 = vtanh.pop %v831
    %v853 = vrot.slane %v795, 6
    %v855 = vmul.f32 %v850, %v853
    %857 = vrot.lane.b32.xlu0 %v851, 64
    %v858 = vpop.permute.xlu0 %857
    %v860 = vmul.f32 %v850, %v858
    %862 = vrot.lane.b32.xlu0 %v860, 32
    %v863 = vpop.permute.xlu0 %862
    %v865 = vadd.f32 %v855, %v863
    %v866 = vtanh.pop %v865
    %868 = vrot.lane.b32.xlu0 %v866, 64
    %v869 = vpop.permute.xlu0 %868
    %v871 = vmul.f32 %v850, %v869
    %v872 = vrot.slane %v794, 6
    %v874 = vsel %vm633, %v871, %v872
    %v875 = vsel %vm633, %v865, %v853
    %v876 = vsel %vm633, %v871, 0.0
    %878 = vrot.lane.b32.xlu0 %v876, 32
    %v879 = vpop.permute.xlu0 %878
    %881 = vst.msk [vmem:[#allocation2 + $0x8] sm:$0xc0] %vm560, %v879
    %883 = vrot.lane.b32.xlu0 %v874, 32
    %v884 = vpop.permute.xlu0 %883
    %886 = vst.msk [vmem:[#allocation9 - $0x6] sm:$0xc0] %vm560, %v884
    %888 = vrot.lane.b32.xlu0 %v875, 96
    %v889 = vpop.permute.xlu0 %888
    %891 = vst.msk [vmem:[#allocation10 - $0x6] sm:$0xc0] %vm560, %v889
    %v892 = vld [vmem:[#allocation2] sm:$0xff]
    %v893 = vld [vmem:[#allocation2 + $0x8] sm:$0xff]
    %s894 = scalar_lea.vmem %s5, 32
    %v895 = vld [vmem:[%s894] sm:$0xff]
    %v896 = vld [vmem:[%s894 + $0x8] sm:$0xff]
    %v897 = vld [vmem:[%s894 + $0x10] sm:$0xff]
    %v898 = vld [vmem:[%s894 + $0x18] sm:$0xff]
    %s899 = scalar_lea.vmem [#allocation8], 32
    %v900 = vld [vmem:[%s899] sm:$0xff]
    %v901 = vld [vmem:[%s899 + $0x8] sm:$0xff]
    %v902 = vld [vmem:[%s899 + $0x10] sm:$0xff]
    %v903 = vld [vmem:[%s899 + $0x18] sm:$0xff]
    %s904 = scalar_lea.vmem %s7, 1
    %v905 = vld [vmem:[%s904] sm:$0x1]
    %v907 = vperm.slane %v905, 0
    %v910 = vsel %vm136, %v892, 0
    %v913 = vsel %vm136, %v893, 0
    %915 = vmatpush.msra.mxu0 0.0
    %916 = vmatpush.msra.mxu0 0.0
    %917 = vmatpush.msra.mxu0 0.0
    %918 = vmatpush.msra.mxu0 0.0
    %919 = vmatpush.msra.mxu0 0.0
    %920 = vmatpush.msra.mxu0 0.0
    %921 = vmatpush.msra.mxu0 0.0
    %922 = vmatpush.msra.mxu0 0.0
    %923 = vmatpush.msra.mxu0 0.0
    %924 = vmatpush.msra.mxu0 0.0
    %925 = vmatpush.msra.mxu0 0.0
    %926 = vmatpush.msra.mxu0 0.0
    %927 = vmatpush.msra.mxu0 %v898
    %928 = vmatpush.msra.mxu0 %v897
    %929 = vmatpush.msra.mxu0 %v896
    %930 = vmatpush.msra.mxu0 %v895
    %931 = vmatmul.f32.gmra.mxu0 %v910
    %v932 = vpop.f32.mrf.mxu0
    %v933 = vadd.f32 %v907, %v932
    %934 = vmatmul.f32.gmra.mxu0 %v913
    %v935 = vpop.f32.mrf.mxu0
    %v936 = vadd.f32 %v907, %v935
    %937 = vdwg.mxu0
    %s938 = scalar_lea.vmem %s8, 2
    %v939 = vld [vmem:[%s938] sm:$0x3]
    %s940 = scalar_lea.vmem %s9, 2
    %v941 = vld [vmem:[%s940] sm:$0x3]
    %v943 = vsel %vm136, %v939, 0
    %945 = vmatpush.msra.mxu0 0.0
    %946 = vmatpush.msra.mxu0 0.0
    %947 = vmatpush.msra.mxu0 0.0
    %948 = vmatpush.msra.mxu0 0.0
    %949 = vmatpush.msra.mxu0 0.0
    %950 = vmatpush.msra.mxu0 0.0
    %951 = vmatpush.msra.mxu0 0.0
    %952 = vmatpush.msra.mxu0 0.0
    %953 = vmatpush.msra.mxu0 0.0
    %954 = vmatpush.msra.mxu0 0.0
    %955 = vmatpush.msra.mxu0 0.0
    %956 = vmatpush.msra.mxu0 0.0
    %957 = vmatpush.msra.mxu0 %v903
    %958 = vmatpush.msra.mxu0 %v902
    %959 = vmatpush.msra.mxu0 %v901
    %960 = vmatpush.msra.mxu0 %v900
    %961 = vmatmul.f32.gmra.mxu0 %v943
    %v962 = vpop.f32.mrf.mxu0
    %v963 = vadd.f32 0.0, %v962
    %964 = vdwg.mxu0
    %v965 = vadd.f32 %v933, %v963
    %v966 = vxor.u32 %v965, 2147483648
    %v967 = vmul.f32 %v966, 1.442695
    %v968 = vpow.pop %v967
    %v969 = vadd.f32 %v968, 1.0
    %v970 = vrcp.pop %v969
    %v971 = vmul.f32 %v969, %v970
    %v972 = vsub.f32 1.0, %v971
    %v973 = vmul.f32 %v970, %v972
    %v974 = vadd.f32 %v970, %v973
    %vm975 = vweird.f32 %v969
    %vm976 = vweird.f32 %v970
    %vm977 = vmor %vm975, %vm976
    %v978 = vsel %vm977, %v970, %v974
    %v979 = vand.u32 2147483647, %v969
    %vm980 = vcmp.eq.f32.partialorder %v979, 8.507059e+37
    %v981 = vand.u32 %v969, 2147483648
    %v982 = vor.u32 1.1754944e-38, %v981
    %v983 = vsel %vm980, %v982, %v978
    %v984 = vmul.f32 1.0, %v983
    %v985 = vtanh.pop %v965
    %987 = vrot.lane.b32.xlu0 %v941, 32
    %v988 = vpop.permute.xlu0 %987
    %v990 = vmul.f32 %v984, %v988
    %992 = vrot.lane.b32.xlu0 %v985, 64
    %v993 = vpop.permute.xlu0 %992
    %v995 = vmul.f32 %v984, %v993
    %997 = vrot.lane.b32.xlu0 %v995, 32
    %v998 = vpop.permute.xlu0 %997
    %v1000 = vadd.f32 %v990, %v998
    %v1001 = vtanh.pop %v1000
    %1003 = vrot.lane.b32.xlu0 %v1001, 64
    %v1004 = vpop.permute.xlu0 %1003
    %v1006 = vmul.f32 %v984, %v1004
    %1007 = vrot.lane.b32.xlu0 %v939, 96
    %v1008 = vpop.permute.xlu0 %1007
    %v1010 = vsel %vm307, %v1006, %v1008
    %v1011 = vsel %vm307, %v1000, %v988
    %v1012 = vsel %vm307, %v1006, 0.0
    %1014 = vrot.lane.b32.xlu0 %v1012, 32
    %v1015 = vpop.permute.xlu0 %1014
    %1017 = vst.msk [vmem:[#allocation2] sm:$0x3] %vm318, %v1015
    %1019 = vrot.lane.b32.xlu0 %v1010, 32
    %v1020 = vpop.permute.xlu0 %1019
    %v1021 = vsel %vm136, %v1020, 0
    %1023 = vmatpush.msra.mxu0 0.0
    %1024 = vmatpush.msra.mxu0 0.0
    %1025 = vmatpush.msra.mxu0 0.0
    %1026 = vmatpush.msra.mxu0 0.0
    %1027 = vmatpush.msra.mxu0 0.0
    %1028 = vmatpush.msra.mxu0 0.0
    %1029 = vmatpush.msra.mxu0 0.0
    %1030 = vmatpush.msra.mxu0 0.0
    %1031 = vmatpush.msra.mxu0 0.0
    %1032 = vmatpush.msra.mxu0 0.0
    %1033 = vmatpush.msra.mxu0 0.0
    %1034 = vmatpush.msra.mxu0 0.0
    %1035 = vmatpush.msra.mxu0 %v903
    %1036 = vmatpush.msra.mxu0 %v902
    %1037 = vmatpush.msra.mxu0 %v901
    %1038 = vmatpush.msra.mxu0 %v900
    %1039 = vmatmul.f32.gmra.mxu0 %v1021
    %v1040 = vpop.f32.mrf.mxu0
    %v1041 = vadd.f32 0.0, %v1040
    %1042 = vdwg.mxu0
    %v1044 = vrot.slane %v1041, 6
    %v1046 = vadd.f32 %v933, %v1044
    %v1047 = vxor.u32 %v1046, 2147483648
    %v1048 = vmul.f32 %v1047, 1.442695
    %v1049 = vpow.pop %v1048
    %v1050 = vadd.f32 %v1049, 1.0
    %v1051 = vrcp.pop %v1050
    %v1052 = vmul.f32 %v1050, %v1051
    %v1053 = vsub.f32 1.0, %v1052
    %v1054 = vmul.f32 %v1051, %v1053
    %v1055 = vadd.f32 %v1051, %v1054
    %vm1056 = vweird.f32 %v1050
    %vm1057 = vweird.f32 %v1051
    %vm1058 = vmor %vm1056, %vm1057
    %v1059 = vsel %vm1058, %v1051, %v1055
    %v1060 = vand.u32 2147483647, %v1050
    %vm1061 = vcmp.eq.f32.partialorder %v1060, 8.507059e+37
    %v1062 = vand.u32 %v1050, 2147483648
    %v1063 = vor.u32 1.1754944e-38, %v1062
    %v1064 = vsel %vm1061, %v1063, %v1059
    %v1065 = vmul.f32 1.0, %v1064
    %v1066 = vtanh.pop %v1046
    %v1068 = vrot.slane %v1011, 6
    %v1070 = vmul.f32 %v1065, %v1068
    %1072 = vrot.lane.b32.xlu0 %v1066, 64
    %v1073 = vpop.permute.xlu0 %1072
    %v1075 = vmul.f32 %v1065, %v1073
    %1077 = vrot.lane.b32.xlu0 %v1075, 32
    %v1078 = vpop.permute.xlu0 %1077
    %v1080 = vadd.f32 %v1070, %v1078
    %v1081 = vtanh.pop %v1080
    %1083 = vrot.lane.b32.xlu0 %v1081, 64
    %v1084 = vpop.permute.xlu0 %1083
    %v1086 = vmul.f32 %v1065, %v1084
    %v1087 = vrot.slane %v1010, 6
    %v1089 = vsel %vm307, %v1086, %v1087
    %v1090 = vsel %vm307, %v1080, %v1068
    %v1091 = vsel %vm307, %v1086, 0.0
    %1093 = vrot.lane.b32.xlu0 %v1091, 32
    %v1094 = vpop.permute.xlu0 %1093
    %1096 = vst.msk [vmem:[#allocation2] sm:$0xc] %vm398, %v1094
    %v1098 = vrot.slane %v1089, 2
    %1099 = vrot.lane.b32.xlu0 %v1098, 32
    %v1100 = vpop.permute.xlu0 %1099
    %v1101 = vsel %vm136, %v1100, 0
    %1103 = vmatpush.msra.mxu0 0.0
    %1104 = vmatpush.msra.mxu0 0.0
    %1105 = vmatpush.msra.mxu0 0.0
    %1106 = vmatpush.msra.mxu0 0.0
    %1107 = vmatpush.msra.mxu0 0.0
    %1108 = vmatpush.msra.mxu0 0.0
    %1109 = vmatpush.msra.mxu0 0.0
    %1110 = vmatpush.msra.mxu0 0.0
    %1111 = vmatpush.msra.mxu0 0.0
    %1112 = vmatpush.msra.mxu0 0.0
    %1113 = vmatpush.msra.mxu0 0.0
    %1114 = vmatpush.msra.mxu0 0.0
    %1115 = vmatpush.msra.mxu0 %v903
    %1116 = vmatpush.msra.mxu0 %v902
    %1117 = vmatpush.msra.mxu0 %v901
    %1118 = vmatpush.msra.mxu0 %v900
    %1119 = vmatmul.f32.gmra.mxu0 %v1101
    %v1120 = vpop.f32.mrf.mxu0
    %v1121 = vadd.f32 0.0, %v1120
    %1122 = vdwg.mxu0
    %v1124 = vrot.slane %v1121, 4
    %v1126 = vadd.f32 %v933, %v1124
    %v1127 = vxor.u32 %v1126, 2147483648
    %v1128 = vmul.f32 %v1127, 1.442695
    %v1129 = vpow.pop %v1128
    %v1130 = vadd.f32 %v1129, 1.0
    %v1131 = vrcp.pop %v1130
    %v1132 = vmul.f32 %v1130, %v1131
    %v1133 = vsub.f32 1.0, %v1132
    %v1134 = vmul.f32 %v1131, %v1133
    %v1135 = vadd.f32 %v1131, %v1134
    %vm1136 = vweird.f32 %v1130
    %vm1137 = vweird.f32 %v1131
    %vm1138 = vmor %vm1136, %vm1137
    %v1139 = vsel %vm1138, %v1131, %v1135
    %v1140 = vand.u32 2147483647, %v1130
    %vm1141 = vcmp.eq.f32.partialorder %v1140, 8.507059e+37
    %v1142 = vand.u32 %v1130, 2147483648
    %v1143 = vor.u32 1.1754944e-38, %v1142
    %v1144 = vsel %vm1141, %v1143, %v1139
    %v1145 = vmul.f32 1.0, %v1144
    %v1146 = vtanh.pop %v1126
    %v1148 = vrot.slane %v1090, 6
    %v1150 = vmul.f32 %v1145, %v1148
    %1152 = vrot.lane.b32.xlu0 %v1146, 64
    %v1153 = vpop.permute.xlu0 %1152
    %v1155 = vmul.f32 %v1145, %v1153
    %1157 = vrot.lane.b32.xlu0 %v1155, 32
    %v1158 = vpop.permute.xlu0 %1157
    %v1160 = vadd.f32 %v1150, %v1158
    %v1161 = vtanh.pop %v1160
    %1163 = vrot.lane.b32.xlu0 %v1161, 64
    %v1164 = vpop.permute.xlu0 %1163
    %v1166 = vmul.f32 %v1145, %v1164
    %v1167 = vrot.slane %v1089, 6
    %v1169 = vsel %vm307, %v1166, %v1167
    %v1170 = vsel %vm307, %v1160, %v1148
    %v1171 = vsel %vm307, %v1166, 0.0
    %1173 = vrot.lane.b32.xlu0 %v1171, 32
    %v1174 = vpop.permute.xlu0 %1173
    %1176 = vst.msk [vmem:[#allocation2] sm:$0x30] %vm479, %v1174
    %v1178 = vrot.slane %v1169, 4
    %1179 = vrot.lane.b32.xlu0 %v1178, 32
    %v1180 = vpop.permute.xlu0 %1179
    %v1181 = vsel %vm136, %v1180, 0
    %1183 = vmatpush.msra.mxu0 0.0
    %1184 = vmatpush.msra.mxu0 0.0
    %1185 = vmatpush.msra.mxu0 0.0
    %1186 = vmatpush.msra.mxu0 0.0
    %1187 = vmatpush.msra.mxu0 0.0
    %1188 = vmatpush.msra.mxu0 0.0
    %1189 = vmatpush.msra.mxu0 0.0
    %1190 = vmatpush.msra.mxu0 0.0
    %1191 = vmatpush.msra.mxu0 0.0
    %1192 = vmatpush.msra.mxu0 0.0
    %1193 = vmatpush.msra.mxu0 0.0
    %1194 = vmatpush.msra.mxu0 0.0
    %1195 = vmatpush.msra.mxu0 %v903
    %1196 = vmatpush.msra.mxu0 %v902
    %1197 = vmatpush.msra.mxu0 %v901
    %1198 = vmatpush.msra.mxu0 %v900
    %1199 = vmatmul.f32.gmra.mxu0 %v1181
    %v1200 = vpop.f32.mrf.mxu0
    %v1201 = vadd.f32 0.0, %v1200
    %1202 = vdwg.mxu0
    %v1204 = vrot.slane %v1201, 2
    %v1206 = vadd.f32 %v933, %v1204
    %v1207 = vxor.u32 %v1206, 2147483648
    %v1208 = vmul.f32 %v1207, 1.442695
    %v1209 = vpow.pop %v1208
    %v1210 = vadd.f32 %v1209, 1.0
    %v1211 = vrcp.pop %v1210
    %v1212 = vmul.f32 %v1210, %v1211
    %v1213 = vsub.f32 1.0, %v1212
    %v1214 = vmul.f32 %v1211, %v1213
    %v1215 = vadd.f32 %v1211, %v1214
    %vm1216 = vweird.f32 %v1210
    %vm1217 = vweird.f32 %v1211
    %vm1218 = vmor %vm1216, %vm1217
    %v1219 = vsel %vm1218, %v1211, %v1215
    %v1220 = vand.u32 2147483647, %v1210
    %vm1221 = vcmp.eq.f32.partialorder %v1220, 8.507059e+37
    %v1222 = vand.u32 %v1210, 2147483648
    %v1223 = vor.u32 1.1754944e-38, %v1222
    %v1224 = vsel %vm1221, %v1223, %v1219
    %v1225 = vmul.f32 1.0, %v1224
    %v1226 = vtanh.pop %v1206
    %v1228 = vrot.slane %v1170, 6
    %v1230 = vmul.f32 %v1225, %v1228
    %1232 = vrot.lane.b32.xlu0 %v1226, 64
    %v1233 = vpop.permute.xlu0 %1232
    %v1235 = vmul.f32 %v1225, %v1233
    %1237 = vrot.lane.b32.xlu0 %v1235, 32
    %v1238 = vpop.permute.xlu0 %1237
    %v1240 = vadd.f32 %v1230, %v1238
    %v1241 = vtanh.pop %v1240
    %1243 = vrot.lane.b32.xlu0 %v1241, 64
    %v1244 = vpop.permute.xlu0 %1243
    %v1246 = vmul.f32 %v1225, %v1244
    %v1247 = vrot.slane %v1169, 6
    %v1249 = vsel %vm307, %v1246, %v1247
    %v1250 = vsel %vm307, %v1240, %v1228
    %v1251 = vsel %vm307, %v1246, 0.0
    %1253 = vrot.lane.b32.xlu0 %v1251, 32
    %v1254 = vpop.permute.xlu0 %1253
    %1256 = vst.msk [vmem:[#allocation2] sm:$0xc0] %vm560, %v1254
    %v1258 = vrot.slane %v1249, 6
    %1259 = vrot.lane.b32.xlu0 %v1258, 32
    %v1260 = vpop.permute.xlu0 %1259
    %v1261 = vsel %vm136, %v1260, 0
    %1263 = vmatpush.msra.mxu0 0.0
    %1264 = vmatpush.msra.mxu0 0.0
    %1265 = vmatpush.msra.mxu0 0.0
    %1266 = vmatpush.msra.mxu0 0.0
    %1267 = vmatpush.msra.mxu0 0.0
    %1268 = vmatpush.msra.mxu0 0.0
    %1269 = vmatpush.msra.mxu0 0.0
    %1270 = vmatpush.msra.mxu0 0.0
    %1271 = vmatpush.msra.mxu0 0.0
    %1272 = vmatpush.msra.mxu0 0.0
    %1273 = vmatpush.msra.mxu0 0.0
    %1274 = vmatpush.msra.mxu0 0.0
    %1275 = vmatpush.msra.mxu0 %v903
    %1276 = vmatpush.msra.mxu0 %v902
    %1277 = vmatpush.msra.mxu0 %v901
    %1278 = vmatpush.msra.mxu0 %v900
    %1279 = vmatmul.f32.gmra.mxu0 %v1261
    %v1280 = vpop.f32.mrf.mxu0
    %v1281 = vadd.f32 0.0, %v1280
    %1282 = vdwg.mxu0
    %v1283 = vadd.f32 %v936, %v1281
    %v1284 = vxor.u32 %v1283, 2147483648
    %v1285 = vmul.f32 %v1284, 1.442695
    %v1286 = vpow.pop %v1285
    %v1287 = vadd.f32 %v1286, 1.0
    %v1288 = vrcp.pop %v1287
    %v1289 = vmul.f32 %v1287, %v1288
    %v1290 = vsub.f32 1.0, %v1289
    %v1291 = vmul.f32 %v1288, %v1290
    %v1292 = vadd.f32 %v1288, %v1291
    %vm1293 = vweird.f32 %v1287
    %vm1294 = vweird.f32 %v1288
    %vm1295 = vmor %vm1293, %vm1294
    %v1296 = vsel %vm1295, %v1288, %v1292
    %v1297 = vand.u32 2147483647, %v1287
    %vm1298 = vcmp.eq.f32.partialorder %v1297, 8.507059e+37
    %v1299 = vand.u32 %v1287, 2147483648
    %v1300 = vor.u32 1.1754944e-38, %v1299
    %v1301 = vsel %vm1298, %v1300, %v1296
    %v1302 = vmul.f32 1.0, %v1301
    %v1303 = vtanh.pop %v1283
    %v1305 = vrot.slane %v1250, 6
    %v1307 = vmul.f32 %v1302, %v1305
    %1309 = vrot.lane.b32.xlu0 %v1303, 64
    %v1310 = vpop.permute.xlu0 %1309
    %v1312 = vmul.f32 %v1302, %v1310
    %1314 = vrot.lane.b32.xlu0 %v1312, 32
    %v1315 = vpop.permute.xlu0 %1314
    %v1317 = vadd.f32 %v1307, %v1315
    %v1318 = vtanh.pop %v1317
    %1320 = vrot.lane.b32.xlu0 %v1318, 64
    %v1321 = vpop.permute.xlu0 %1320
    %v1323 = vmul.f32 %v1302, %v1321
    %v1325 = vsel %vm633, %v1323, %v1258
    %v1326 = vsel %vm633, %v1317, %v1305
    %v1327 = vsel %vm633, %v1323, 0.0
    %1329 = vrot.lane.b32.xlu0 %v1327, 32
    %v1330 = vpop.permute.xlu0 %1329
    %1332 = vst.msk [vmem:[#allocation2 + $0x8] sm:$0x3] %vm318, %v1330
    %1334 = vrot.lane.b32.xlu0 %v1325, 32
    %v1335 = vpop.permute.xlu0 %1334
    %v1336 = vsel %vm136, %v1335, 0
    %1338 = vmatpush.msra.mxu0 0.0
    %1339 = vmatpush.msra.mxu0 0.0
    %1340 = vmatpush.msra.mxu0 0.0
    %1341 = vmatpush.msra.mxu0 0.0
    %1342 = vmatpush.msra.mxu0 0.0
    %1343 = vmatpush.msra.mxu0 0.0
    %1344 = vmatpush.msra.mxu0 0.0
    %1345 = vmatpush.msra.mxu0 0.0
    %1346 = vmatpush.msra.mxu0 0.0
    %1347 = vmatpush.msra.mxu0 0.0
    %1348 = vmatpush.msra.mxu0 0.0
    %1349 = vmatpush.msra.mxu0 0.0
    %1350 = vmatpush.msra.mxu0 %v903
    %1351 = vmatpush.msra.mxu0 %v902
    %1352 = vmatpush.msra.mxu0 %v901
    %1353 = vmatpush.msra.mxu0 %v900
    %1354 = vmatmul.f32.gmra.mxu0 %v1336
    %v1355 = vpop.f32.mrf.mxu0
    %v1356 = vadd.f32 0.0, %v1355
    %1357 = vdwg.mxu0
    %v1359 = vrot.slane %v1356, 6
    %v1361 = vadd.f32 %v936, %v1359
    %v1362 = vxor.u32 %v1361, 2147483648
    %v1363 = vmul.f32 %v1362, 1.442695
    %v1364 = vpow.pop %v1363
    %v1365 = vadd.f32 %v1364, 1.0
    %v1366 = vrcp.pop %v1365
    %v1367 = vmul.f32 %v1365, %v1366
    %v1368 = vsub.f32 1.0, %v1367
    %v1369 = vmul.f32 %v1366, %v1368
    %v1370 = vadd.f32 %v1366, %v1369
    %vm1371 = vweird.f32 %v1365
    %vm1372 = vweird.f32 %v1366
    %vm1373 = vmor %vm1371, %vm1372
    %v1374 = vsel %vm1373, %v1366, %v1370
    %v1375 = vand.u32 2147483647, %v1365
    %vm1376 = vcmp.eq.f32.partialorder %v1375, 8.507059e+37
    %v1377 = vand.u32 %v1365, 2147483648
    %v1378 = vor.u32 1.1754944e-38, %v1377
    %v1379 = vsel %vm1376, %v1378, %v1374
    %v1380 = vmul.f32 1.0, %v1379
    %v1381 = vtanh.pop %v1361
    %v1383 = vrot.slane %v1326, 6
    %v1385 = vmul.f32 %v1380, %v1383
    %1387 = vrot.lane.b32.xlu0 %v1381, 64
    %v1388 = vpop.permute.xlu0 %1387
    %v1390 = vmul.f32 %v1380, %v1388
    %1392 = vrot.lane.b32.xlu0 %v1390, 32
    %v1393 = vpop.permute.xlu0 %1392
    %v1395 = vadd.f32 %v1385, %v1393
    %v1396 = vtanh.pop %v1395
    %1398 = vrot.lane.b32.xlu0 %v1396, 64
    %v1399 = vpop.permute.xlu0 %1398
    %v1401 = vmul.f32 %v1380, %v1399
    %v1402 = vrot.slane %v1325, 6
    %v1404 = vsel %vm633, %v1401, %v1402
    %v1405 = vsel %vm633, %v1395, %v1383
    %v1406 = vsel %vm633, %v1401, 0.0
    %1408 = vrot.lane.b32.xlu0 %v1406, 32
    %v1409 = vpop.permute.xlu0 %1408
    %1411 = vst.msk [vmem:[#allocation2 + $0x8] sm:$0xc] %vm398, %v1409
    %v1413 = vrot.slane %v1404, 2
    %1414 = vrot.lane.b32.xlu0 %v1413, 32
    %v1415 = vpop.permute.xlu0 %1414
    %v1416 = vsel %vm136, %v1415, 0
    %1418 = vmatpush.msra.mxu0 0.0
    %1419 = vmatpush.msra.mxu0 0.0
    %1420 = vmatpush.msra.mxu0 0.0
    %1421 = vmatpush.msra.mxu0 0.0
    %1422 = vmatpush.msra.mxu0 0.0
    %1423 = vmatpush.msra.mxu0 0.0
    %1424 = vmatpush.msra.mxu0 0.0
    %1425 = vmatpush.msra.mxu0 0.0
    %1426 = vmatpush.msra.mxu0 0.0
    %1427 = vmatpush.msra.mxu0 0.0
    %1428 = vmatpush.msra.mxu0 0.0
    %1429 = vmatpush.msra.mxu0 0.0
    %1430 = vmatpush.msra.mxu0 %v903
    %1431 = vmatpush.msra.mxu0 %v902
    %1432 = vmatpush.msra.mxu0 %v901
    %1433 = vmatpush.msra.mxu0 %v900
    %1434 = vmatmul.f32.gmra.mxu0 %v1416
    %v1435 = vpop.f32.mrf.mxu0
    %v1436 = vadd.f32 0.0, %v1435
    %1437 = vdwg.mxu0
    %v1439 = vrot.slane %v1436, 4
    %v1441 = vadd.f32 %v936, %v1439
    %v1442 = vxor.u32 %v1441, 2147483648
    %v1443 = vmul.f32 %v1442, 1.442695
    %v1444 = vpow.pop %v1443
    %v1445 = vadd.f32 %v1444, 1.0
    %v1446 = vrcp.pop %v1445
    %v1447 = vmul.f32 %v1445, %v1446
    %v1448 = vsub.f32 1.0, %v1447
    %v1449 = vmul.f32 %v1446, %v1448
    %v1450 = vadd.f32 %v1446, %v1449
    %vm1451 = vweird.f32 %v1445
    %vm1452 = vweird.f32 %v1446
    %vm1453 = vmor %vm1451, %vm1452
    %v1454 = vsel %vm1453, %v1446, %v1450
    %v1455 = vand.u32 2147483647, %v1445
    %vm1456 = vcmp.eq.f32.partialorder %v1455, 8.507059e+37
    %v1457 = vand.u32 %v1445, 2147483648
    %v1458 = vor.u32 1.1754944e-38, %v1457
    %v1459 = vsel %vm1456, %v1458, %v1454
    %v1460 = vmul.f32 1.0, %v1459
    %v1461 = vtanh.pop %v1441
    %v1463 = vrot.slane %v1405, 6
    %v1465 = vmul.f32 %v1460, %v1463
    %1467 = vrot.lane.b32.xlu0 %v1461, 64
    %v1468 = vpop.permute.xlu0 %1467
    %v1470 = vmul.f32 %v1460, %v1468
    %1472 = vrot.lane.b32.xlu0 %v1470, 32
    %v1473 = vpop.permute.xlu0 %1472
    %v1475 = vadd.f32 %v1465, %v1473
    %v1476 = vtanh.pop %v1475
    %1478 = vrot.lane.b32.xlu0 %v1476, 64
    %v1479 = vpop.permute.xlu0 %1478
    %v1481 = vmul.f32 %v1460, %v1479
    %v1482 = vrot.slane %v1404, 6
    %v1484 = vsel %vm633, %v1481, %v1482
    %v1485 = vsel %vm633, %v1475, %v1463
    %v1486 = vsel %vm633, %v1481, 0.0
    %1488 = vrot.lane.b32.xlu0 %v1486, 32
    %v1489 = vpop.permute.xlu0 %1488
    %1491 = vst.msk [vmem:[#allocation2 + $0x8] sm:$0x30] %vm479, %v1489
    %v1493 = vrot.slane %v1484, 4
    %1494 = vrot.lane.b32.xlu0 %v1493, 32
    %v1495 = vpop.permute.xlu0 %1494
    %v1496 = vsel %vm136, %v1495, 0
    %1498 = vmatpush.msra.mxu0 0.0
    %1499 = vmatpush.msra.mxu0 0.0
    %1500 = vmatpush.msra.mxu0 0.0
    %1501 = vmatpush.msra.mxu0 0.0
    %1502 = vmatpush.msra.mxu0 0.0
    %1503 = vmatpush.msra.mxu0 0.0
    %1504 = vmatpush.msra.mxu0 0.0
    %1505 = vmatpush.msra.mxu0 0.0
    %1506 = vmatpush.msra.mxu0 0.0
    %1507 = vmatpush.msra.mxu0 0.0
    %1508 = vmatpush.msra.mxu0 0.0
    %1509 = vmatpush.msra.mxu0 0.0
    %1510 = vmatpush.msra.mxu0 %v903
    %1511 = vmatpush.msra.mxu0 %v902
    %1512 = vmatpush.msra.mxu0 %v901
    %1513 = vmatpush.msra.mxu0 %v900
    %1514 = vmatmul.f32.gmra.mxu0 %v1496
    %v1515 = vpop.f32.mrf.mxu0
    %v1516 = vadd.f32 0.0, %v1515
    %1517 = vdwg.mxu0
    %v1519 = vrot.slane %v1516, 2
    %v1521 = vadd.f32 %v936, %v1519
    %v1522 = vxor.u32 %v1521, 2147483648
    %v1523 = vmul.f32 %v1522, 1.442695
    %v1524 = vpow.pop %v1523
    %v1525 = vadd.f32 %v1524, 1.0
    %v1526 = vrcp.pop %v1525
    %v1527 = vmul.f32 %v1525, %v1526
    %v1528 = vsub.f32 1.0, %v1527
    %v1529 = vmul.f32 %v1526, %v1528
    %v1530 = vadd.f32 %v1526, %v1529
    %vm1531 = vweird.f32 %v1525
    %vm1532 = vweird.f32 %v1526
    %vm1533 = vmor %vm1531, %vm1532
    %v1534 = vsel %vm1533, %v1526, %v1530
    %v1535 = vand.u32 2147483647, %v1525
    %vm1536 = vcmp.eq.f32.partialorder %v1535, 8.507059e+37
    %v1537 = vand.u32 %v1525, 2147483648
    %v1538 = vor.u32 1.1754944e-38, %v1537
    %v1539 = vsel %vm1536, %v1538, %v1534
    %v1540 = vmul.f32 1.0, %v1539
    %v1541 = vtanh.pop %v1521
    %v1543 = vrot.slane %v1485, 6
    %v1545 = vmul.f32 %v1540, %v1543
    %1547 = vrot.lane.b32.xlu0 %v1541, 64
    %v1548 = vpop.permute.xlu0 %1547
    %v1550 = vmul.f32 %v1540, %v1548
    %1552 = vrot.lane.b32.xlu0 %v1550, 32
    %v1553 = vpop.permute.xlu0 %1552
    %v1555 = vadd.f32 %v1545, %v1553
    %v1556 = vtanh.pop %v1555
    %1558 = vrot.lane.b32.xlu0 %v1556, 64
    %v1559 = vpop.permute.xlu0 %1558
    %v1561 = vmul.f32 %v1540, %v1559
    %v1562 = vrot.slane %v1484, 6
    %v1564 = vsel %vm633, %v1561, %v1562
    %v1565 = vsel %vm633, %v1555, %v1543
    %v1566 = vsel %vm633, %v1561, 0.0
    %1568 = vrot.lane.b32.xlu0 %v1566, 32
    %v1569 = vpop.permute.xlu0 %1568
    %1571 = vst.msk [vmem:[#allocation2 + $0x8] sm:$0xc0] %vm560, %v1569
    %1573 = vrot.lane.b32.xlu0 %v1564, 32
    %v1574 = vpop.permute.xlu0 %1573
    %s1576 = scalar_lea.vmem [#allocation9], 2
    %1577 = vst.msk [vmem:[%s1576 - $0x6] sm:$0xc0] %vm560, %v1574
    %1579 = vrot.lane.b32.xlu0 %v1565, 96
    %v1580 = vpop.permute.xlu0 %1579
    %s1582 = scalar_lea.vmem [#allocation10], 2
    %1583 = vst.msk [vmem:[%s1582 - $0x6] sm:$0xc0] %vm560, %v1580
    %v1584 = vld [vmem:[#allocation2] sm:$0xff]
    %v1585 = vld [vmem:[#allocation2 + $0x8] sm:$0xff]
    %v1586 = vsel %vm136, %v1584, 0.0
    %v1587 = vsel %vm136, %v1585, 0.0
    %v1588 = vadd.f32 %v1586, %v1587
    %v1589 = vrot.slane %v1588, 4
    %v1590 = vadd.f32 %v1588, %v1589
    %v1591 = vrot.slane %v1590, 2
    %v1592 = vadd.f32 %v1590, %v1591
    %v1593 = vrot.slane %v1592, 1
    %v1594 = vadd.f32 %v1592, %v1593
    %v1595 = vmul.f32 %v1594, %v152
    %v1596 = vsub.f32 %v1584, %v1595
    %v1597 = vsub.f32 %v1585, %v1595
    %v1598 = vmul.f32 %v1596, %v1596
    %v1599 = vmul.f32 %v1597, %v1597
    %v1600 = vsel %vm136, %v1598, 0.0
    %v1601 = vsel %vm136, %v1599, 0.0
    %v1602 = vadd.f32 %v1600, %v1601
    %v1603 = vrot.slane %v1602, 4
    %v1604 = vadd.f32 %v1602, %v1603
    %v1605 = vrot.slane %v1604, 2
    %v1606 = vadd.f32 %v1604, %v1605
    %v1607 = vrot.slane %v1606, 1
    %v1608 = vadd.f32 %v1606, %v1607
    %v1609 = vmul.f32 %v1608, %v152
    %v1610 = vadd.f32 %v1609, 1e-05
    %v1611 = vrsqrt.pop %v1610
    %v1612 = vmul.f32 %v1611, %v1610
    %v1613 = vmul.f32 %v1612, %v1611
    %v1614 = vmul.f32 0.5, %v1613
    %v1615 = vsub.f32 1.5, %v1614
    %v1616 = vmul.f32 %v1611, %v1615
    %vm1617 = vweird.f32 %v1610
    %vm1618 = vweird.f32 %v1611
    %vm1619 = vmor %vm1617, %vm1618
    %v1620 = vsel %vm1619, %v1611, %v1616
    %v1621 = vmul.f32 %v1596, %v1620
    %v1622 = vmul.f32 %v1597, %v1620
    %v1623 = vmul.f32 %v1621, %v182
    %v1624 = vmul.f32 %v1622, %v182
    %v1625 = vadd.f32 %v1623, %v187
    %v1626 = vadd.f32 %v1624, %v187
    %v1627 = vld [vmem:[%s11] sm:$0xff]
    %v1628 = vld [vmem:[%s11 + $0x8] sm:$0xff]
    %v1629 = vld [vmem:[%s11 + $0x10] sm:$0xff]
    %v1630 = vld [vmem:[%s11 + $0x18] sm:$0xff]
    %v1631 = vld [vmem:[%s12] sm:$0x1]
    %v1633 = vperm.slane %v1631, 0
    %v1636 = vsel %vm136, %v1625, 0
    %v1639 = vsel %vm136, %v1626, 0
    %1641 = vmatpush.msra.mxu0 0.0
    %1642 = vmatpush.msra.mxu0 0.0
    %1643 = vmatpush.msra.mxu0 0.0
    %1644 = vmatpush.msra.mxu0 0.0
    %1645 = vmatpush.msra.mxu0 0.0
    %1646 = vmatpush.msra.mxu0 0.0
    %1647 = vmatpush.msra.mxu0 0.0
    %1648 = vmatpush.msra.mxu0 0.0
    %1649 = vmatpush.msra.mxu0 0.0
    %1650 = vmatpush.msra.mxu0 0.0
    %1651 = vmatpush.msra.mxu0 0.0
    %1652 = vmatpush.msra.mxu0 0.0
    %1653 = vmatpush.msra.mxu0 %v1630
    %1654 = vmatpush.msra.mxu0 %v1629
    %1655 = vmatpush.msra.mxu0 %v1628
    %1656 = vmatpush.msra.mxu0 %v1627
    %1657 = vmatmul.f32.gmra.mxu0 %v1636
    %v1658 = vpop.f32.mrf.mxu0
    %v1659 = vadd.f32 %v1633, %v1658
    %1660 = vmatmul.f32.gmra.mxu0 %v1639
    %v1661 = vpop.f32.mrf.mxu0
    %v1662 = vadd.f32 %v1633, %v1661
    %1663 = vdwg.mxu0
    %1664 = vst.msk [vmem:[%s13] sm:$0xff] %vm106, %v1659
    %1665 = vst.msk [vmem:[%s13 + $0x8] sm:$0xff] %vm106, %v1662
    // Predicated region
    $region66: #{rnn_forward.1} parent=1 // pred_check
      _
    $region67: #{rnn_forward.1} parent=1 // pred_check_branch
      %1667 = sbr.rel (0) target = $region69
    $region68: #{rnn_forward.1} parent=1 // pred_region
      _
    $region69: #{rnn_forward.1} parent=1 // pred_fallthru
      _
    // Predicated region
    $region70: #{rnn_forward.1} parent=1 // pred_check
      _
    $region71: #{rnn_forward.1} parent=1 // pred_check_branch
      %1669 = sbr.rel (0) target = $region73
    $region72: #{rnn_forward.1} parent=1 // pred_region
      %1671 = vsyncadd [#allocation5], 0
      %s1672 = sshll.u32 [#allocation9], 4
      %s1673 = int_to_ptr.vmem [resolvable:$true] %s1672
      %s1674 = sshll.u32 %s14, 4
      %s1675 = int_to_ptr.hbm [resolvable:$true] %s1674
      %1680 = dma.vmem_to_hbm [thread:$0]  %s1673, 64, %s1675, [#allocation5], 32, 32, 2
    $region73: #{rnn_forward.1} parent=1 // pred_fallthru
      _
    // Predicated region
    $region74: #{rnn_forward.1} parent=1 // pred_check
      _
    $region75: #{rnn_forward.1} parent=1 // pred_check_branch
      %1682 = sbr.rel (0) target = $region77
    $region76: #{rnn_forward.1} parent=1 // pred_region
      %1684 = vsyncadd [#allocation11], 0
      %s1685 = sshll.u32 [#allocation10], 4
      %s1686 = int_to_ptr.vmem [resolvable:$true] %s1685
      %s1687 = sshll.u32 %s15, 4
      %s1688 = int_to_ptr.hbm [resolvable:$true] %s1687
      %1693 = dma.vmem_to_hbm [thread:$0]  %s1686, 64, %s1688, [#allocation11], 32, 32, 2
    $region77: #{rnn_forward.1} parent=1 // pred_fallthru
      _
    // Predicated region
    $region78: #{rnn_forward.1} parent=1 // pred_check
      _
    $region79: #{rnn_forward.1} parent=1 // pred_check_branch
      %1695 = sbr.rel (0) target = $region81
    $region80: #{rnn_forward.1} parent=1 // pred_region
      _
    $region81: #{rnn_forward.1} parent=1 // pred_fallthru
      _
    // Predicated region
    $region82: #{rnn_forward.1} parent=1 // pred_check
      _
    $region83: #{rnn_forward.1} parent=1 // pred_check_branch
      %1697 = sbr.rel (0) target = $region85
    $region84: #{rnn_forward.1} parent=1 // pred_region
      %1699 = dma.done [#allocation5], 64
    $region85: #{rnn_forward.1} parent=1 // pred_fallthru
      _
    // Predicated region
    $region86: #{rnn_forward.1} parent=1 // pred_check
      _
    $region87: #{rnn_forward.1} parent=1 // pred_check_branch
      %1701 = sbr.rel (0) target = $region89
    $region88: #{rnn_forward.1} parent=1 // pred_region
      %1703 = dma.done [#allocation11], 64
    $region89: #{rnn_forward.1} parent=1 // pred_fallthru
      _
    %1704 = vsyncpa [#allocation4], 1
    %1705 = vsyncpa [#allocation7], 1
    %1706 = vsyncpa [#allocation5], 1
    %1707 = vsyncpa [#allocation11], 1

</llo_original>
